<compile_context>
chip_gen: v5e
topology: v5e:2x2
jax: 0.10.0
libtpu: 0.0.40
codegen_flags: <defaults>
</compile_context>

<pallas_src>
import math

import jax
import jax.numpy as jnp
from jax import lax
from jax.experimental import pallas as pl
from jax.experimental.pallas import tpu as pltpu  # noqa: F401  (TPU backend assumed)

# ---- static config (small, consistent with the module) ----
BATCH = 2
SEQ = 8
EMBED = 32
NUM_HEADS = 4
HEAD_DIM = EMBED // NUM_HEADS
FF_DIM = 4 * EMBED
LN_EPS = 1e-5
_SQRT2 = math.sqrt(2.0)


def _layer_norm(v, g, b):
    mu = jnp.mean(v, axis=-1, keepdims=True)
    var = jnp.mean((v - mu) ** 2, axis=-1, keepdims=True)
    return (v - mu) * lax.rsqrt(var + LN_EPS) * g + b


def _gelu_exact(v):
    # PyTorch nn.GELU() default: exact erf-based GELU.
    return 0.5 * v * (1.0 + lax.erf(v / jnp.float32(_SQRT2)))


def block_kernel(x_ref, wqkv_ref, wp_ref, w1_ref, w2_ref,
                 small_ref, wide_ref, o_ref):
    """Single invocation; everything resident in VMEM.

    x_ref     : (B*S, E)   flattened activations
    wqkv_ref  : (E, 3E)    fused Q/K/V projection weight
    wp_ref    : (E, E)     attention output projection weight
    w1_ref    : (E, 4E)    FF first linear weight
    w2_ref    : (4E, E)    FF second linear weight
    small_ref : (8, E)     rows = [ln1_g, ln1_b, ln2_g, ln2_b, b_proj, b_ff2, 0, 0]
    wide_ref  : (2, 4E)    row0[:3E] = fused QKV bias, row1 = b_ff1
    """
    E, H, D, S, B = EMBED, NUM_HEADS, HEAD_DIM, SEQ, BATCH

    x = x_ref[...].astype(jnp.float32)            # (B*S, E)
    small = small_ref[...]                        # (8, E)
    wide = wide_ref[...]                          # (2, 4E)
    ln1_g, ln1_b = small[0:1], small[1:2]         # (1, E)
    ln2_g, ln2_b = small[2:3], small[3:4]
    b_proj, b_ff2 = small[4:5], small[5:6]
    b_qkv = wide[0:1, :3 * E]                     # (1, 3E)
    b_ff1 = wide[1:2]                             # (1, 4E)

    # ---- attention branch: LN1 -> fused QKV -> per-head causal SDPA -> proj ----
    h1 = _layer_norm(x, ln1_g, ln1_b)                                   # (B*S, E)
    qkv = jnp.dot(h1, wqkv_ref[...],
                  preferred_element_type=jnp.float32) + b_qkv           # (B*S, 3E)
    q = qkv[:, 0:E]
    k = qkv[:, E:2 * E]
    v = qkv[:, 2 * E:3 * E]

    row = lax.broadcasted_iota(jnp.int32, (S, S), 0)
    col = lax.broadcasted_iota(jnp.int32, (S, S), 1)
    causal = (col <= row)[None, :, :]            # (1, S, S), diagonal unmasked
    inv_sqrt_d = jnp.float32(1.0 / math.sqrt(D))

    # Static loop over the (tiny, static) batch; heads are the einsum batch dim.
    ctx = []
    for b in range(B):
        lo, hi = b * S, (b + 1) * S
        qb = q[lo:hi].reshape(S, H, D)
        kb = k[lo:hi].reshape(S, H, D)
        vb = v[lo:hi].reshape(S, H, D)
        s = jnp.einsum('qhd,khd->hqk', qb, kb,
                       preferred_element_type=jnp.float32) * inv_sqrt_d  # (H,S,S)
        s = jnp.where(causal, s, jnp.float32(-1e30))
        s = s - jnp.max(s, axis=-1, keepdims=True)
        p = jnp.exp(s)
        denom = jnp.sum(p, axis=-1, keepdims=True)
        p = p * pl.reciprocal(denom, approx=False)
        yb = jnp.einsum('hqk,khd->qhd', p, vb,
                        preferred_element_type=jnp.float32)              # (S,H,D)
        ctx.append(yb.reshape(S, E))
    y = jnp.concatenate(ctx, axis=0)                                     # (B*S, E)

    y = jnp.dot(y, wp_ref[...], preferred_element_type=jnp.float32) + b_proj
    x1 = x + y                                                           # residual 1

    # ---- feed-forward branch: LN2 -> Linear -> GELU -> Linear ----
    h2 = _layer_norm(x1, ln2_g, ln2_b)
    ff = jnp.dot(h2, w1_ref[...], preferred_element_type=jnp.float32) + b_ff1
    ff = _gelu_exact(ff)
    ff = jnp.dot(ff, w2_ref[...], preferred_element_type=jnp.float32) + b_ff2

    o_ref[...] = (x1 + ff).astype(o_ref.dtype)                           # residual 2


def block_forward(x, kernel_args):
    B, S, E = x.shape
    xf = x.reshape(B * S, E)           # free XLA reshape; kernel works on the flat slab
    out = pl.pallas_call(
        block_kernel,
        out_shape=jax.ShapeDtypeStruct((B * S, E), x.dtype),
    )(xf, *kernel_args)
    return out.reshape(B, S, E)


def init_params(key, embed_dim):
    """PyTorch-like parameter set (separate q/k/v, etc.) used by the reference."""
    ks = jax.random.split(key, 6)
    scale = 0.02

    def lin(k, fan_in, fan_out):
        kw, kb = jax.random.split(k)
        w = scale * jax.random.normal(kw, (fan_in, fan_out), jnp.float32)
        b = scale * jax.random.normal(kb, (fan_out,), jnp.float32)
        return w, b

    p = dict(
        ln1_g=jnp.ones((embed_dim,), jnp.float32),
        ln1_b=jnp.zeros((embed_dim,), jnp.float32),
        ln2_g=jnp.ones((embed_dim,), jnp.float32),
        ln2_b=jnp.zeros((embed_dim,), jnp.float32),
    )
    p['wq'], p['bq'] = lin(ks[0], embed_dim, embed_dim)
    p['wk'], p['bk'] = lin(ks[1], embed_dim, embed_dim)
    p['wv'], p['bv'] = lin(ks[2], embed_dim, embed_dim)
    p['wp'], p['bp'] = lin(ks[3], embed_dim, embed_dim)
    p['w1'], p['b1'] = lin(ks[4], embed_dim, 4 * embed_dim)
    p['w2'], p['b2'] = lin(ks[5], 4 * embed_dim, embed_dim)
    return p


def pack_kernel_args(p):
    """Fuse QKV and pack the small vectors into two tiles (fewer DMAs)."""
    E = EMBED
    zeros = jnp.zeros((E,), jnp.float32)
    wqkv = jnp.concatenate([p['wq'], p['wk'], p['wv']], axis=1)          # (E, 3E)
    small = jnp.stack([p['ln1_g'], p['ln1_b'], p['ln2_g'], p['ln2_b'],
                       p['bp'], p['b2'], zeros, zeros], axis=0)          # (8, E)
    b_qkv = jnp.concatenate([p['bq'], p['bk'], p['bv']], axis=0)         # (3E,)
    wide = jnp.stack([jnp.concatenate([b_qkv, zeros], axis=0),
                      p['b1']], axis=0)                                  # (2, 4E)
    return (wqkv, p['wp'], p['w1'], p['w2'], small, wide)


def block_reference(x, p):
    """Pure-JAX reference (same math as the PyTorch module) for validation."""
    B, S, E = x.shape
    H, D = NUM_HEADS, HEAD_DIM

    h1 = _layer_norm(x, p['ln1_g'], p['ln1_b'])
    q = (h1 @ p['wq'] + p['bq']).reshape(B, S, H, D)
    k = (h1 @ p['wk'] + p['bk']).reshape(B, S, H, D)
    v = (h1 @ p['wv'] + p['bv']).reshape(B, S, H, D)
    attn = jnp.einsum('bqhd,bkhd->bhqk', q, k) / math.sqrt(D)
    mask = jnp.tril(jnp.ones((S, S), bool))[None, None]
    attn = jnp.where(mask, attn, -jnp.inf)
    attn = jax.nn.softmax(attn, axis=-1)
    y = jnp.einsum('bhqk,bkhd->bqhd', attn, v).reshape(B, S, E)
    y = y @ p['wp'] + p['bp']
    x1 = x + y
    h2 = _layer_norm(x1, p['ln2_g'], p['ln2_b'])
    ff = _gelu_exact(h2 @ p['w1'] + p['b1']) @ p['w2'] + p['b2']
    return x1 + ff


if __name__ == "__main__":
    key = jax.random.PRNGKey(0)
    kx, kp = jax.random.split(key)
    x = jax.random.normal(kx, (BATCH, SEQ, EMBED), jnp.float32)
    params = init_params(kp, EMBED)
    kernel_args = pack_kernel_args(params)

    out = block_forward(x, kernel_args)
    out = jax.block_until_ready(out)

    ref = block_reference(x, params)
    assert out.shape == (BATCH, SEQ, EMBED)
    assert jnp.allclose(out, ref, rtol=1e-5, atol=1e-5), "mismatch vs reference"

    print("KERNEL_OK")
</pallas_src>

<mosaic_0001>
module attributes {stable_mosaic.version = 11 : i64} {
  func.func @block_kernel(%arg0: memref<16x32xf32, #tpu.memory_space<vmem>>, %arg1: memref<32x96xf32, #tpu.memory_space<vmem>>, %arg2: memref<32x32xf32, #tpu.memory_space<vmem>>, %arg3: memref<32x128xf32, #tpu.memory_space<vmem>>, %arg4: memref<128x32xf32, #tpu.memory_space<vmem>>, %arg5: memref<8x32xf32, #tpu.memory_space<vmem>>, %arg6: memref<2x128xf32, #tpu.memory_space<vmem>>, %arg7: memref<16x32xf32, #tpu.memory_space<vmem>>) attributes {dimension_semantics = [], scalar_prefetch = 0 : i64, scratch_operands = 0 : i64, tpu.core_type = #tpu.core_type<tc>} {
    %c0 = arith.constant 0 : index
    %c0_0 = arith.constant 0 : index
    %0 = vector.load %arg0[%c0, %c0_0] : memref<16x32xf32, #tpu.memory_space<vmem>>, vector<16x32xf32>
    %c0_1 = arith.constant 0 : index
    %c0_2 = arith.constant 0 : index
    %1 = vector.load %arg5[%c0_1, %c0_2] : memref<8x32xf32, #tpu.memory_space<vmem>>, vector<8x32xf32>
    %c0_3 = arith.constant 0 : index
    %c0_4 = arith.constant 0 : index
    %2 = vector.load %arg6[%c0_3, %c0_4] : memref<2x128xf32, #tpu.memory_space<vmem>>, vector<2x128xf32>
    %3 = vector.extract_strided_slice %1 {offsets = [0, 0], sizes = [1, 32], strides = [1, 1]} : vector<8x32xf32> to vector<1x32xf32>
    %4 = vector.extract_strided_slice %1 {offsets = [1, 0], sizes = [1, 32], strides = [1, 1]} : vector<8x32xf32> to vector<1x32xf32>
    %5 = vector.extract_strided_slice %1 {offsets = [2, 0], sizes = [1, 32], strides = [1, 1]} : vector<8x32xf32> to vector<1x32xf32>
    %6 = vector.extract_strided_slice %1 {offsets = [3, 0], sizes = [1, 32], strides = [1, 1]} : vector<8x32xf32> to vector<1x32xf32>
    %7 = vector.extract_strided_slice %1 {offsets = [4, 0], sizes = [1, 32], strides = [1, 1]} : vector<8x32xf32> to vector<1x32xf32>
    %8 = vector.extract_strided_slice %1 {offsets = [5, 0], sizes = [1, 32], strides = [1, 1]} : vector<8x32xf32> to vector<1x32xf32>
    %9 = vector.extract_strided_slice %2 {offsets = [0, 0], sizes = [1, 96], strides = [1, 1]} : vector<2x128xf32> to vector<1x96xf32>
    %10 = vector.extract_strided_slice %2 {offsets = [1, 0], sizes = [1, 128], strides = [1, 1]} : vector<2x128xf32> to vector<1x128xf32>
    %cst = arith.constant dense<0.000000e+00> : vector<16xf32>
    %11 = vector.multi_reduction <add>, %0, %cst [1] : vector<16x32xf32> to vector<16xf32>
    %12 = vector.shape_cast %11 : vector<16xf32> to vector<16x1xf32>
    %cst_5 = arith.constant 3.200000e+01 : f32
    %13 = vector.broadcast %cst_5 : f32 to vector<16x1xf32>
    %14 = arith.divf %12, %13 : vector<16x1xf32>
    %15 = vector.broadcast %14 : vector<16x1xf32> to vector<16x32xf32>
    %16 = arith.subf %0, %15 : vector<16x32xf32>
    %17 = arith.mulf %16, %16 : vector<16x32xf32>
    %cst_6 = arith.constant dense<0.000000e+00> : vector<16xf32>
    %18 = vector.multi_reduction <add>, %17, %cst_6 [1] : vector<16x32xf32> to vector<16xf32>
    %19 = vector.shape_cast %18 : vector<16xf32> to vector<16x1xf32>
    %cst_7 = arith.constant 3.200000e+01 : f32
    %20 = vector.broadcast %cst_7 : f32 to vector<16x1xf32>
    %21 = arith.divf %19, %20 : vector<16x1xf32>
    %22 = vector.broadcast %14 : vector<16x1xf32> to vector<16x32xf32>
    %23 = arith.subf %0, %22 : vector<16x32xf32>
    %cst_8 = arith.constant 9.99999974E-6 : f32
    %24 = vector.broadcast %cst_8 : f32 to vector<16x1xf32>
    %25 = arith.addf %21, %24 : vector<16x1xf32>
    %26 = math.rsqrt %25 : vector<16x1xf32>
    %27 = vector.broadcast %26 : vector<16x1xf32> to vector<16x32xf32>
    %28 = arith.mulf %23, %27 : vector<16x32xf32>
    %29 = vector.broadcast %3 : vector<1x32xf32> to vector<16x32xf32>
    %30 = arith.mulf %28, %29 : vector<16x32xf32>
    %31 = vector.broadcast %4 : vector<1x32xf32> to vector<16x32xf32>
    %32 = arith.addf %30, %31 : vector<16x32xf32>
    %c0_9 = arith.constant 0 : index
    %c0_10 = arith.constant 0 : index
    %33 = vector.load %arg1[%c0_9, %c0_10] : memref<32x96xf32, #tpu.memory_space<vmem>>, vector<32x96xf32>
    %cst_11 = arith.constant dense<0.000000e+00> : vector<16x96xf32>
    %34 = tpu.matmul %32, %33, %cst_11 {dimension_numbers = #tpu.dot_dimension_numbers<[1], [0], [0], [1], [0, 0, 1, 1], [], []>} : vector<16x32xf32>, vector<32x96xf32>, vector<16x96xf32> -> vector<16x96xf32>
    %35 = vector.broadcast %9 : vector<1x96xf32> to vector<16x96xf32>
    %36 = arith.addf %34, %35 : vector<16x96xf32>
    %37 = vector.extract_strided_slice %36 {offsets = [0, 0], sizes = [16, 32], strides = [1, 1]} : vector<16x96xf32> to vector<16x32xf32>
    %38 = vector.extract_strided_slice %36 {offsets = [0, 32], sizes = [16, 32], strides = [1, 1]} : vector<16x96xf32> to vector<16x32xf32>
    %39 = vector.extract_strided_slice %36 {offsets = [0, 64], sizes = [16, 32], strides = [1, 1]} : vector<16x96xf32> to vector<16x32xf32>
    %40 = tpu.iota {dimensions = array<i32: 0>} : vector<8x8xi32>
    %41 = tpu.iota {dimensions = array<i32: 1>} : vector<8x8xi32>
    %42 = arith.cmpi sle, %41, %40 : vector<8x8xi32>
    %43 = vector.shape_cast %42 : vector<8x8xi1> to vector<1x8x8xi1>
    %44 = vector.extract_strided_slice %37 {offsets = [0, 0], sizes = [8, 32], strides = [1, 1]} : vector<16x32xf32> to vector<8x32xf32>
    %45 = vector.shape_cast %44 : vector<8x32xf32> to vector<8x4x8xf32>
    %46 = vector.extract_strided_slice %38 {offsets = [0, 0], sizes = [8, 32], strides = [1, 1]} : vector<16x32xf32> to vector<8x32xf32>
    %47 = vector.shape_cast %46 : vector<8x32xf32> to vector<8x4x8xf32>
    %48 = vector.extract_strided_slice %39 {offsets = [0, 0], sizes = [8, 32], strides = [1, 1]} : vector<16x32xf32> to vector<8x32xf32>
    %49 = vector.shape_cast %48 : vector<8x32xf32> to vector<8x4x8xf32>
    "tpu.trace_start"() <{level = 10 : i32, message = "qhd,khd->hqk"}> : () -> ()
    %cst_12 = arith.constant dense<0.000000e+00> : vector<4x8x8xf32>
    %50 = tpu.matmul %45, %47, %cst_12 {dimension_numbers = #tpu.dot_dimension_numbers<[2], [2], [0], [0], [0, 1, 0, 0, 1, 0], [1], [1]>} : vector<8x4x8xf32>, vector<8x4x8xf32>, vector<4x8x8xf32> -> vector<4x8x8xf32>
    "tpu.trace_stop"() : () -> ()
    %cst_13 = arith.constant 0.353553385 : f32
    %51 = vector.broadcast %cst_13 : f32 to vector<4x8x8xf32>
    %52 = arith.mulf %50, %51 : vector<4x8x8xf32>
    %cst_14 = arith.constant -1.000000e+30 : f32
    %53 = vector.shape_cast %43 : vector<1x8x8xi1> to vector<1x8x8xi1>
    %54 = vector.broadcast %53 : vector<1x8x8xi1> to vector<4x8x8xi1>
    %55 = vector.broadcast %cst_14 : f32 to vector<4x8x8xf32>
    %56 = arith.select %54, %52, %55 : vector<4x8x8xi1>, vector<4x8x8xf32>
    %cst_15 = arith.constant dense<0xFF800000> : vector<4x8xf32>
    %57 = vector.multi_reduction <maximumf>, %56, %cst_15 [2] : vector<4x8x8xf32> to vector<4x8xf32>
    %58 = vector.shape_cast %57 : vector<4x8xf32> to vector<4x8x1xf32>
    %59 = vector.broadcast %58 : vector<4x8x1xf32> to vector<4x8x8xf32>
    %60 = arith.subf %56, %59 : vector<4x8x8xf32>
    %61 = math.exp %60 : vector<4x8x8xf32>
    %cst_16 = arith.constant dense<0.000000e+00> : vector<4x8xf32>
    %62 = vector.multi_reduction <add>, %61, %cst_16 [2] : vector<4x8x8xf32> to vector<4x8xf32>
    %63 = vector.shape_cast %62 : vector<4x8xf32> to vector<4x8x1xf32>
    %64 = tpu.reciprocal %63 : vector<4x8x1xf32> -> vector<4x8x1xf32>
    %65 = vector.broadcast %64 : vector<4x8x1xf32> to vector<4x8x8xf32>
    %66 = arith.mulf %61, %65 : vector<4x8x8xf32>
    "tpu.trace_start"() <{level = 10 : i32, message = "hqk,khd->qhd"}> : () -> ()
    %cst_17 = arith.constant dense<0.000000e+00> : vector<4x8x8xf32>
    %67 = tpu.matmul %49, %66, %cst_17 {dimension_numbers = #tpu.dot_dimension_numbers<[0], [2], [2], [1], [0, 1, 0, 2, 1, 1], [1], [0]>} : vector<8x4x8xf32>, vector<4x8x8xf32>, vector<4x8x8xf32> -> vector<4x8x8xf32>
    %68 = tpu.transpose %67, [2, 0, 1] : vector<4x8x8xf32> -> vector<8x4x8xf32>
    "tpu.trace_stop"() : () -> ()
    %69 = vector.shape_cast %68 : vector<8x4x8xf32> to vector<8x32xf32>
    %70 = vector.extract_strided_slice %37 {offsets = [8, 0], sizes = [8, 32], strides = [1, 1]} : vector<16x32xf32> to vector<8x32xf32>
    %71 = vector.shape_cast %70 : vector<8x32xf32> to vector<8x4x8xf32>
    %72 = vector.extract_strided_slice %38 {offsets = [8, 0], sizes = [8, 32], strides = [1, 1]} : vector<16x32xf32> to vector<8x32xf32>
    %73 = vector.shape_cast %72 : vector<8x32xf32> to vector<8x4x8xf32>
    %74 = vector.extract_strided_slice %39 {offsets = [8, 0], sizes = [8, 32], strides = [1, 1]} : vector<16x32xf32> to vector<8x32xf32>
    %75 = vector.shape_cast %74 : vector<8x32xf32> to vector<8x4x8xf32>
    "tpu.trace_start"() <{level = 10 : i32, message = "qhd,khd->hqk"}> : () -> ()
    %cst_18 = arith.constant dense<0.000000e+00> : vector<4x8x8xf32>
    %76 = tpu.matmul %71, %73, %cst_18 {dimension_numbers = #tpu.dot_dimension_numbers<[2], [2], [0], [0], [0, 1, 0, 0, 1, 0], [1], [1]>} : vector<8x4x8xf32>, vector<8x4x8xf32>, vector<4x8x8xf32> -> vector<4x8x8xf32>
    "tpu.trace_stop"() : () -> ()
    %cst_19 = arith.constant 0.353553385 : f32
    %77 = vector.broadcast %cst_19 : f32 to vector<4x8x8xf32>
    %78 = arith.mulf %76, %77 : vector<4x8x8xf32>
    %cst_20 = arith.constant -1.000000e+30 : f32
    %79 = vector.shape_cast %43 : vector<1x8x8xi1> to vector<1x8x8xi1>
    %80 = vector.broadcast %79 : vector<1x8x8xi1> to vector<4x8x8xi1>
    %81 = vector.broadcast %cst_20 : f32 to vector<4x8x8xf32>
    %82 = arith.select %80, %78, %81 : vector<4x8x8xi1>, vector<4x8x8xf32>
    %cst_21 = arith.constant dense<0xFF800000> : vector<4x8xf32>
    %83 = vector.multi_reduction <maximumf>, %82, %cst_21 [2] : vector<4x8x8xf32> to vector<4x8xf32>
    %84 = vector.shape_cast %83 : vector<4x8xf32> to vector<4x8x1xf32>
    %85 = vector.broadcast %84 : vector<4x8x1xf32> to vector<4x8x8xf32>
    %86 = arith.subf %82, %85 : vector<4x8x8xf32>
    %87 = math.exp %86 : vector<4x8x8xf32>
    %cst_22 = arith.constant dense<0.000000e+00> : vector<4x8xf32>
    %88 = vector.multi_reduction <add>, %87, %cst_22 [2] : vector<4x8x8xf32> to vector<4x8xf32>
    %89 = vector.shape_cast %88 : vector<4x8xf32> to vector<4x8x1xf32>
    %90 = tpu.reciprocal %89 : vector<4x8x1xf32> -> vector<4x8x1xf32>
    %91 = vector.broadcast %90 : vector<4x8x1xf32> to vector<4x8x8xf32>
    %92 = arith.mulf %87, %91 : vector<4x8x8xf32>
    "tpu.trace_start"() <{level = 10 : i32, message = "hqk,khd->qhd"}> : () -> ()
    %cst_23 = arith.constant dense<0.000000e+00> : vector<4x8x8xf32>
    %93 = tpu.matmul %75, %92, %cst_23 {dimension_numbers = #tpu.dot_dimension_numbers<[0], [2], [2], [1], [0, 1, 0, 2, 1, 1], [1], [0]>} : vector<8x4x8xf32>, vector<4x8x8xf32>, vector<4x8x8xf32> -> vector<4x8x8xf32>
    %94 = tpu.transpose %93, [2, 0, 1] : vector<4x8x8xf32> -> vector<8x4x8xf32>
    "tpu.trace_stop"() : () -> ()
    %95 = vector.shape_cast %94 : vector<8x4x8xf32> to vector<8x32xf32>
    %96 = tpu.concatenate %69, %95 in 0 : vector<8x32xf32>, vector<8x32xf32> -> vector<16x32xf32>
    %c0_24 = arith.constant 0 : index
    %c0_25 = arith.constant 0 : index
    %97 = vector.load %arg2[%c0_24, %c0_25] : memref<32x32xf32, #tpu.memory_space<vmem>>, vector<32x32xf32>
    %cst_26 = arith.constant dense<0.000000e+00> : vector<16x32xf32>
    %98 = tpu.matmul %96, %97, %cst_26 {dimension_numbers = #tpu.dot_dimension_numbers<[1], [0], [0], [1], [0, 0, 1, 1], [], []>} : vector<16x32xf32>, vector<32x32xf32>, vector<16x32xf32> -> vector<16x32xf32>
    %99 = vector.broadcast %7 : vector<1x32xf32> to vector<16x32xf32>
    %100 = arith.addf %98, %99 : vector<16x32xf32>
    %101 = arith.addf %0, %100 : vector<16x32xf32>
    %cst_27 = arith.constant dense<0.000000e+00> : vector<16xf32>
    %102 = vector.multi_reduction <add>, %101, %cst_27 [1] : vector<16x32xf32> to vector<16xf32>
    %103 = vector.shape_cast %102 : vector<16xf32> to vector<16x1xf32>
    %cst_28 = arith.constant 3.200000e+01 : f32
    %104 = vector.broadcast %cst_28 : f32 to vector<16x1xf32>
    %105 = arith.divf %103, %104 : vector<16x1xf32>
    %106 = vector.broadcast %105 : vector<16x1xf32> to vector<16x32xf32>
    %107 = arith.subf %101, %106 : vector<16x32xf32>
    %108 = arith.mulf %107, %107 : vector<16x32xf32>
    %cst_29 = arith.constant dense<0.000000e+00> : vector<16xf32>
    %109 = vector.multi_reduction <add>, %108, %cst_29 [1] : vector<16x32xf32> to vector<16xf32>
    %110 = vector.shape_cast %109 : vector<16xf32> to vector<16x1xf32>
    %cst_30 = arith.constant 3.200000e+01 : f32
    %111 = vector.broadcast %cst_30 : f32 to vector<16x1xf32>
    %112 = arith.divf %110, %111 : vector<16x1xf32>
    %113 = vector.broadcast %105 : vector<16x1xf32> to vector<16x32xf32>
    %114 = arith.subf %101, %113 : vector<16x32xf32>
    %cst_31 = arith.constant 9.99999974E-6 : f32
    %115 = vector.broadcast %cst_31 : f32 to vector<16x1xf32>
    %116 = arith.addf %112, %115 : vector<16x1xf32>
    %117 = math.rsqrt %116 : vector<16x1xf32>
    %118 = vector.broadcast %117 : vector<16x1xf32> to vector<16x32xf32>
    %119 = arith.mulf %114, %118 : vector<16x32xf32>
    %120 = vector.broadcast %5 : vector<1x32xf32> to vector<16x32xf32>
    %121 = arith.mulf %119, %120 : vector<16x32xf32>
    %122 = vector.broadcast %6 : vector<1x32xf32> to vector<16x32xf32>
    %123 = arith.addf %121, %122 : vector<16x32xf32>
    %c0_32 = arith.constant 0 : index
    %c0_33 = arith.constant 0 : index
    %124 = vector.load %arg3[%c0_32, %c0_33] : memref<32x128xf32, #tpu.memory_space<vmem>>, vector<32x128xf32>
    %cst_34 = arith.constant dense<0.000000e+00> : vector<16x128xf32>
    %125 = tpu.matmul %123, %124, %cst_34 {dimension_numbers = #tpu.dot_dimension_numbers<[1], [0], [0], [1], [0, 0, 1, 1], [], []>} : vector<16x32xf32>, vector<32x128xf32>, vector<16x128xf32> -> vector<16x128xf32>
    %126 = vector.broadcast %10 : vector<1x128xf32> to vector<16x128xf32>
    %127 = arith.addf %125, %126 : vector<16x128xf32>
    %cst_35 = arith.constant 5.000000e-01 : f32
    %128 = vector.broadcast %cst_35 : f32 to vector<16x128xf32>
    %129 = arith.mulf %128, %127 : vector<16x128xf32>
    %cst_36 = arith.constant 1.41421354 : f32
    %130 = vector.broadcast %cst_36 : f32 to vector<16x128xf32>
    %131 = arith.divf %127, %130 : vector<16x128xf32>
    %132 = math.erf %131 : vector<16x128xf32>
    %cst_37 = arith.constant 1.000000e+00 : f32
    %133 = vector.broadcast %cst_37 : f32 to vector<16x128xf32>
    %134 = arith.addf %133, %132 : vector<16x128xf32>
    %135 = arith.mulf %129, %134 : vector<16x128xf32>
    %c0_38 = arith.constant 0 : index
    %c0_39 = arith.constant 0 : index
    %136 = vector.load %arg4[%c0_38, %c0_39] : memref<128x32xf32, #tpu.memory_space<vmem>>, vector<128x32xf32>
    %cst_40 = arith.constant dense<0.000000e+00> : vector<16x32xf32>
    %137 = tpu.matmul %135, %136, %cst_40 {dimension_numbers = #tpu.dot_dimension_numbers<[1], [0], [0], [1], [0, 0, 1, 1], [], []>} : vector<16x128xf32>, vector<128x32xf32>, vector<16x32xf32> -> vector<16x32xf32>
    %138 = vector.broadcast %8 : vector<1x32xf32> to vector<16x32xf32>
    %139 = arith.addf %137, %138 : vector<16x32xf32>
    %140 = arith.addf %101, %139 : vector<16x32xf32>
    %c0_41 = arith.constant 0 : index
    %c0_42 = arith.constant 0 : index
    %141 = vector.load %arg7[%c0_41, %c0_42] : memref<16x32xf32, #tpu.memory_space<vmem>>, vector<16x32xf32>
    tpu.vector_store %arg7[%c0_41, %c0_42], %140 {strides = array<i32>} : memref<16x32xf32, #tpu.memory_space<vmem>>, vector<16x32xf32>,
    return
  }
}

</mosaic_0001>

<llo_original>
// kernel: tpu_custom_call.1
$region0: #{tpu_custom_call.1}
  #allocation0 [shape = 'u32[]', space=smem, size = 0x4, offset = 0x4, fixed_abs, tag = 'smem constant byte address 0x4 - core index']
  #allocation1 [shape = 'u32[72,128]{1,0:T(1,128)}', space=vmem, size = 0x9000, scoped, tag = 'internal scratch']
  %s0 = inlined_call_operand.vmem [shape: f32[16,32], index: 0, kind: input, shape index: {}]
  %s1 = inlined_call_operand.vmem [shape: f32[32,96], index: 1, kind: input, shape index: {}]
  %s2 = inlined_call_operand.vmem [shape: f32[32,32], index: 2, kind: input, shape index: {}]
  %s3 = inlined_call_operand.vmem [shape: f32[32,128], index: 3, kind: input, shape index: {}]
  %s4 = inlined_call_operand.vmem [shape: f32[128,32], index: 4, kind: input, shape index: {}]
  %s5 = inlined_call_operand.vmem [shape: f32[8,32], index: 5, kind: input, shape index: {}]
  %s6 = inlined_call_operand.vmem [shape: f32[2,128], index: 6, kind: input, shape index: {}]
  %s7 = inlined_call_operand.hbm [shape: f32[16,32], index: 7, kind: output, shape index: {}]
  %s8 = sld [smem:[#allocation0]]
  $region38: #{tpu_custom_call.1} parent=0
    _
  %s10 = ssub.s32 1, %s8
  %s11 = scalar_select 0, %s10, %s8
  $region1: #{tpu_custom_call.1} parent=0
    #allocation2 [shape = 'u8[8192]{0}', space=vmem, size = 0x2000, scoped, tag = 'output window, operand 0, single buffered']
    #allocation3 [shape = 's32[1]{0}', space=sflag, size = 0x4, scoped, tag = 'scoped memory for tpu_custom_call.1']
    %12 = vsyncpa [#allocation3], 0
    // Predicated region
    $region2: #{tpu_custom_call.1} parent=1 // pred_check
      _
    $region3: #{tpu_custom_call.1} parent=1 // pred_check_branch
      %14 = sbr.rel (0) target = $region5
    $region4: #{tpu_custom_call.1} parent=1 // pred_region
      _
    $region5: #{tpu_custom_call.1} parent=1 // pred_fallthru
      _
    // Predicated region
    $region6: #{tpu_custom_call.1} parent=1 // pred_check
      _
    $region7: #{tpu_custom_call.1} parent=1 // pred_check_branch
      %16 = sbr.rel (0) target = $region9
    $region8: #{tpu_custom_call.1} parent=1 // pred_region
      _
    $region9: #{tpu_custom_call.1} parent=1 // pred_fallthru
      _
    // Predicated region
    $region10: #{tpu_custom_call.1} parent=1 // pred_check
      _
    $region11: #{tpu_custom_call.1} parent=1 // pred_check_branch
      %18 = sbr.rel (0) target = $region13
    $region12: #{tpu_custom_call.1} parent=1 // pred_region
      _
    $region13: #{tpu_custom_call.1} parent=1 // pred_fallthru
      _
    // Predicated region
    $region14: #{tpu_custom_call.1} parent=1 // pred_check
      _
    $region15: #{tpu_custom_call.1} parent=1 // pred_check_branch
      %20 = sbr.rel (0) target = $region17
    $region16: #{tpu_custom_call.1} parent=1 // pred_region
      _
    $region17: #{tpu_custom_call.1} parent=1 // pred_fallthru
      _
    // Predicated region
    $region18: #{tpu_custom_call.1} parent=1 // pred_check
      _
    $region19: #{tpu_custom_call.1} parent=1 // pred_check_branch
      %22 = sbr.rel (0) target = $region21
    $region20: #{tpu_custom_call.1} parent=1 // pred_region
      _
    $region21: #{tpu_custom_call.1} parent=1 // pred_fallthru
      _
    // Predicated region
    $region22: #{tpu_custom_call.1} parent=1 // pred_check
      _
    $region23: #{tpu_custom_call.1} parent=1 // pred_check_branch
      %24 = sbr.rel (0) target = $region25
    $region24: #{tpu_custom_call.1} parent=1 // pred_region
      _
    $region25: #{tpu_custom_call.1} parent=1 // pred_fallthru
      _
    // Predicated region
    $region26: #{tpu_custom_call.1} parent=1 // pred_check
      _
    $region27: #{tpu_custom_call.1} parent=1 // pred_check_branch
      %26 = sbr.rel (0) target = $region29
    $region28: #{tpu_custom_call.1} parent=1 // pred_region
      _
    $region29: #{tpu_custom_call.1} parent=1 // pred_fallthru
      _
    %v27 = vld [vmem:[%s0] sm:$0xff]
    %v28 = vld [vmem:[%s0 + $0x8] sm:$0xff]
    %v29 = vld [vmem:[%s5] sm:$0xff]
    %v30 = vld [vmem:[%s6] sm:$0x3]
    %vm31 = vcmask 261120
    %v32 = vsel %vm31, %v27, 0.0
    %33 = vadd.xlane.f32.xlu0 %v32
    %v34 = vpop.xlane.xlu0 %33
    %v35 = vsel %vm31, %v28, 0.0
    %36 = vadd.xlane.f32.xlu0 %v35
    %v37 = vpop.xlane.xlu0 %36
    %v38 = vrcp.pop 32.0
    %v39 = vmul.f32 32.0, %v38
    %v40 = vsub.f32 1.0, %v39
    %v41 = vmul.f32 %v38, %v40
    %v42 = vadd.f32 %v38, %v41
    %vm43 = vweird.f32 %v38
    %v44 = vsel %vm43, %v38, %v42
    %v45 = vmul.f32 %v34, %v44
    %v46 = vmul.f32 %v37, %v44
    %v47 = vsub.f32 %v27, %v45
    %v48 = vsub.f32 %v28, %v46
    %v49 = vmul.f32 %v47, %v47
    %v50 = vmul.f32 %v48, %v48
    %v51 = vsel %vm31, %v49, 0.0
    %52 = vadd.xlane.f32.xlu0 %v51
    %v53 = vpop.xlane.xlu0 %52
    %v54 = vsel %vm31, %v50, 0.0
    %55 = vadd.xlane.f32.xlu0 %v54
    %v56 = vpop.xlane.xlu0 %55
    %v57 = vmul.f32 %v53, %v44
    %v58 = vmul.f32 %v56, %v44
    %v59 = vadd.f32 %v57, 1e-05
    %v60 = vadd.f32 %v58, 1e-05
    %v61 = vrsqrt.pop %v59
    %v62 = vmul.f32 %v61, %v59
    %v63 = vmul.f32 %v62, %v61
    %v64 = vmul.f32 0.5, %v63
    %v65 = vsub.f32 1.5, %v64
    %v66 = vmul.f32 %v61, %v65
    %vm67 = vweird.f32 %v59
    %vm68 = vweird.f32 %v61
    %vm69 = vmor %vm67, %vm68
    %v70 = vsel %vm69, %v61, %v66
    %v71 = vrsqrt.pop %v60
    %v72 = vmul.f32 %v71, %v60
    %v73 = vmul.f32 %v72, %v71
    %v74 = vmul.f32 0.5, %v73
    %v75 = vsub.f32 1.5, %v74
    %v76 = vmul.f32 %v71, %v75
    %vm77 = vweird.f32 %v60
    %vm78 = vweird.f32 %v71
    %vm79 = vmor %vm77, %vm78
    %v80 = vsel %vm79, %v71, %v76
    %v81 = vmul.f32 %v47, %v70
    %v82 = vmul.f32 %v48, %v80
    %v83 = vperm.slane %v29, 0
    %v84 = vmul.f32 %v81, %v83
    %v85 = vmul.f32 %v82, %v83
    %v86 = vperm.slane %v29, 1
    %v87 = vadd.f32 %v84, %v86
    %v88 = vadd.f32 %v85, %v86
    %v89 = vld [vmem:[%s1] sm:$0xff]
    %v90 = vld [vmem:[%s1 + $0x8] sm:$0xff]
    %v91 = vld [vmem:[%s1 + $0x10] sm:$0xff]
    %v92 = vld [vmem:[%s1 + $0x18] sm:$0xff]
    %v93 = vperm.slane %v30, 0
    %v95 = vsel %vm31, %v87, 0
    %v98 = vsel %vm31, %v88, 0
    %100 = vmatpush.msra.mxu0 0.0
    %101 = vmatpush.msra.mxu0 0.0
    %102 = vmatpush.msra.mxu0 0.0
    %103 = vmatpush.msra.mxu0 0.0
    %104 = vmatpush.msra.mxu0 0.0
    %105 = vmatpush.msra.mxu0 0.0
    %106 = vmatpush.msra.mxu0 0.0
    %107 = vmatpush.msra.mxu0 0.0
    %108 = vmatpush.msra.mxu0 0.0
    %109 = vmatpush.msra.mxu0 0.0
    %110 = vmatpush.msra.mxu0 0.0
    %111 = vmatpush.msra.mxu0 0.0
    %112 = vmatpush.msra.mxu0 %v92
    %113 = vmatpush.msra.mxu0 %v91
    %114 = vmatpush.msra.mxu0 %v90
    %115 = vmatpush.msra.mxu0 %v89
    %116 = vmatmul.f32.gmra.mxu0 %v95
    %v117 = vpop.f32.mrf.mxu0
    %v118 = vadd.f32 %v93, %v117
    %119 = vmatmul.f32.gmra.mxu0 %v98
    %v120 = vpop.f32.mrf.mxu0
    %v121 = vadd.f32 %v93, %v120
    %122 = vdwg.mxu0
    %v123 = vlaneseq
    %v124 = vshrl.u32 %v123, 7
    %v125 = vlaneseq
    %v126 = vand.u32 %v125, 127
    %vm127 = vcmp.le.s32.totalorder %v126, %v124
    %129 = vrot.lane.b32.xlu0 %v118, 120
    %v130 = vpop.permute.xlu0 %129
    %131 = vrot.lane.b32.xlu0 %v118, 112
    %v132 = vpop.permute.xlu0 %131
    %133 = vrot.lane.b32.xlu0 %v118, 104
    %v134 = vpop.permute.xlu0 %133
    %135 = vrot.lane.b32.xlu0 %v118, 96
    %v136 = vpop.permute.xlu0 %135
    %137 = vrot.lane.b32.xlu0 %v130, 96
    %v138 = vpop.permute.xlu0 %137
    %139 = vrot.lane.b32.xlu0 %v132, 96
    %v140 = vpop.permute.xlu0 %139
    %141 = vrot.lane.b32.xlu0 %v134, 96
    %v142 = vpop.permute.xlu0 %141
    %147 = vxpose.xlu0.b32.start [1/16] %v136, 128
    %148 = vxpose.xlu0.b32.cont [2/16] 0.0, 128
    %149 = vxpose.xlu0.b32.cont [3/16] 0.0, 128
    %150 = vxpose.xlu0.b32.cont [4/16] 0.0, 128
    %151 = vxpose.xlu0.b32.cont [5/16] 0.0, 128
    %152 = vxpose.xlu0.b32.cont [6/16] 0.0, 128
    %153 = vxpose.xlu0.b32.cont [7/16] 0.0, 128
    %154 = vxpose.xlu0.b32.cont [8/16] 0.0, 128
    %155 = vxpose.xlu0.b32.cont [9/16] 0.0, 128
    %156 = vxpose.xlu0.b32.cont [10/16] 0.0, 128
    %157 = vxpose.xlu0.b32.cont [11/16] 0.0, 128
    %158 = vxpose.xlu0.b32.cont [12/16] 0.0, 128
    %159 = vxpose.xlu0.b32.cont [13/16] 0.0, 128
    %160 = vxpose.xlu0.b32.cont [14/16] 0.0, 128
    %161 = vxpose.xlu0.b32.cont [15/16] 0.0, 128
    %162 = vxpose.xlu0.b32.end [16/16] 0.0, 128
    %v163 = vpop.trf.xlu0
    %v164 = vpop.trf.xlu0
    %v165 = vpop.trf.xlu0
    %v166 = vpop.trf.xlu0
    %v167 = vpop.trf.xlu0
    %v168 = vpop.trf.xlu0
    %v169 = vpop.trf.xlu0
    %v170 = vpop.trf.xlu0
    %v171 = vpop.trf.xlu0
    %v172 = vpop.trf.xlu0
    %v173 = vpop.trf.xlu0
    %v174 = vpop.trf.xlu0
    %v175 = vpop.trf.xlu0
    %v176 = vpop.trf.xlu0
    %v177 = vpop.trf.xlu0
    %v178 = vpop.trf.xlu0
    %179 = vxpose.xlu0.b32.start [1/16] %v138, 128
    %180 = vxpose.xlu0.b32.cont [2/16] 0.0, 128
    %181 = vxpose.xlu0.b32.cont [3/16] 0.0, 128
    %182 = vxpose.xlu0.b32.cont [4/16] 0.0, 128
    %183 = vxpose.xlu0.b32.cont [5/16] 0.0, 128
    %184 = vxpose.xlu0.b32.cont [6/16] 0.0, 128
    %185 = vxpose.xlu0.b32.cont [7/16] 0.0, 128
    %186 = vxpose.xlu0.b32.cont [8/16] 0.0, 128
    %187 = vxpose.xlu0.b32.cont [9/16] 0.0, 128
    %188 = vxpose.xlu0.b32.cont [10/16] 0.0, 128
    %189 = vxpose.xlu0.b32.cont [11/16] 0.0, 128
    %190 = vxpose.xlu0.b32.cont [12/16] 0.0, 128
    %191 = vxpose.xlu0.b32.cont [13/16] 0.0, 128
    %192 = vxpose.xlu0.b32.cont [14/16] 0.0, 128
    %193 = vxpose.xlu0.b32.cont [15/16] 0.0, 128
    %194 = vxpose.xlu0.b32.end [16/16] 0.0, 128
    %v195 = vpop.trf.xlu0
    %v196 = vpop.trf.xlu0
    %v197 = vpop.trf.xlu0
    %v198 = vpop.trf.xlu0
    %v199 = vpop.trf.xlu0
    %v200 = vpop.trf.xlu0
    %v201 = vpop.trf.xlu0
    %v202 = vpop.trf.xlu0
    %v203 = vpop.trf.xlu0
    %v204 = vpop.trf.xlu0
    %v205 = vpop.trf.xlu0
    %v206 = vpop.trf.xlu0
    %v207 = vpop.trf.xlu0
    %v208 = vpop.trf.xlu0
    %v209 = vpop.trf.xlu0
    %v210 = vpop.trf.xlu0
    %211 = vxpose.xlu0.b32.start [1/16] %v140, 128
    %212 = vxpose.xlu0.b32.cont [2/16] 0.0, 128
    %213 = vxpose.xlu0.b32.cont [3/16] 0.0, 128
    %214 = vxpose.xlu0.b32.cont [4/16] 0.0, 128
    %215 = vxpose.xlu0.b32.cont [5/16] 0.0, 128
    %216 = vxpose.xlu0.b32.cont [6/16] 0.0, 128
    %217 = vxpose.xlu0.b32.cont [7/16] 0.0, 128
    %218 = vxpose.xlu0.b32.cont [8/16] 0.0, 128
    %219 = vxpose.xlu0.b32.cont [9/16] 0.0, 128
    %220 = vxpose.xlu0.b32.cont [10/16] 0.0, 128
    %221 = vxpose.xlu0.b32.cont [11/16] 0.0, 128
    %222 = vxpose.xlu0.b32.cont [12/16] 0.0, 128
    %223 = vxpose.xlu0.b32.cont [13/16] 0.0, 128
    %224 = vxpose.xlu0.b32.cont [14/16] 0.0, 128
    %225 = vxpose.xlu0.b32.cont [15/16] 0.0, 128
    %226 = vxpose.xlu0.b32.end [16/16] 0.0, 128
    %v227 = vpop.trf.xlu0
    %v228 = vpop.trf.xlu0
    %v229 = vpop.trf.xlu0
    %v230 = vpop.trf.xlu0
    %v231 = vpop.trf.xlu0
    %v232 = vpop.trf.xlu0
    %v233 = vpop.trf.xlu0
    %v234 = vpop.trf.xlu0
    %v235 = vpop.trf.xlu0
    %v236 = vpop.trf.xlu0
    %v237 = vpop.trf.xlu0
    %v238 = vpop.trf.xlu0
    %v239 = vpop.trf.xlu0
    %v240 = vpop.trf.xlu0
    %v241 = vpop.trf.xlu0
    %v242 = vpop.trf.xlu0
    %243 = vxpose.xlu0.b32.start [1/16] %v142, 128
    %244 = vxpose.xlu0.b32.cont [2/16] 0.0, 128
    %245 = vxpose.xlu0.b32.cont [3/16] 0.0, 128
    %246 = vxpose.xlu0.b32.cont [4/16] 0.0, 128
    %247 = vxpose.xlu0.b32.cont [5/16] 0.0, 128
    %248 = vxpose.xlu0.b32.cont [6/16] 0.0, 128
    %249 = vxpose.xlu0.b32.cont [7/16] 0.0, 128
    %250 = vxpose.xlu0.b32.cont [8/16] 0.0, 128
    %251 = vxpose.xlu0.b32.cont [9/16] 0.0, 128
    %252 = vxpose.xlu0.b32.cont [10/16] 0.0, 128
    %253 = vxpose.xlu0.b32.cont [11/16] 0.0, 128
    %254 = vxpose.xlu0.b32.cont [12/16] 0.0, 128
    %255 = vxpose.xlu0.b32.cont [13/16] 0.0, 128
    %256 = vxpose.xlu0.b32.cont [14/16] 0.0, 128
    %257 = vxpose.xlu0.b32.cont [15/16] 0.0, 128
    %258 = vxpose.xlu0.b32.end [16/16] 0.0, 128
    %v259 = vpop.trf.xlu0
    %v260 = vpop.trf.xlu0
    %v261 = vpop.trf.xlu0
    %v262 = vpop.trf.xlu0
    %v263 = vpop.trf.xlu0
    %v264 = vpop.trf.xlu0
    %v265 = vpop.trf.xlu0
    %v266 = vpop.trf.xlu0
    %v267 = vpop.trf.xlu0
    %v268 = vpop.trf.xlu0
    %v269 = vpop.trf.xlu0
    %v270 = vpop.trf.xlu0
    %v271 = vpop.trf.xlu0
    %v272 = vpop.trf.xlu0
    %v273 = vpop.trf.xlu0
    %v274 = vpop.trf.xlu0
    %vm275 = vcmask 64512
    %v276 = vsel %vm275, %v118, 0
    %278 = vmatpush.msra.mxu0 0.0
    %279 = vmatpush.msra.mxu0 0.0
    %280 = vmatpush.msra.mxu0 0.0
    %281 = vmatpush.msra.mxu0 0.0
    %282 = vmatpush.msra.mxu0 0.0
    %283 = vmatpush.msra.mxu0 0.0
    %284 = vmatpush.msra.mxu0 0.0
    %285 = vmatpush.msra.mxu0 0.0
    %286 = vmatpush.msra.mxu0 0.0
    %287 = vmatpush.msra.mxu0 0.0
    %288 = vmatpush.msra.mxu0 0.0
    %289 = vmatpush.msra.mxu0 0.0
    %290 = vmatpush.msra.mxu0 0.0
    %291 = vmatpush.msra.mxu0 0.0
    %292 = vmatpush.msra.mxu0 0.0
    %293 = vmatpush.msra.mxu0 %v163
    %294 = vmatmul.f32.gmra.mxu0 %v276
    %v295 = vpop.f32.mrf.mxu0
    %v296 = vadd.f32 0.0, %v295
    %297 = vdwg.mxu0
    %v298 = vsel %vm275, %v130, 0
    %300 = vmatpush.msra.mxu0 0.0
    %301 = vmatpush.msra.mxu0 0.0
    %302 = vmatpush.msra.mxu0 0.0
    %303 = vmatpush.msra.mxu0 0.0
    %304 = vmatpush.msra.mxu0 0.0
    %305 = vmatpush.msra.mxu0 0.0
    %306 = vmatpush.msra.mxu0 0.0
    %307 = vmatpush.msra.mxu0 0.0
    %308 = vmatpush.msra.mxu0 0.0
    %309 = vmatpush.msra.mxu0 0.0
    %310 = vmatpush.msra.mxu0 0.0
    %311 = vmatpush.msra.mxu0 0.0
    %312 = vmatpush.msra.mxu0 0.0
    %313 = vmatpush.msra.mxu0 0.0
    %314 = vmatpush.msra.mxu0 0.0
    %315 = vmatpush.msra.mxu0 %v195
    %316 = vmatmul.f32.gmra.mxu0 %v298
    %v317 = vpop.f32.mrf.mxu0
    %v318 = vadd.f32 0.0, %v317
    %319 = vdwg.mxu0
    %v320 = vsel %vm275, %v132, 0
    %322 = vmatpush.msra.mxu0 0.0
    %323 = vmatpush.msra.mxu0 0.0
    %324 = vmatpush.msra.mxu0 0.0
    %325 = vmatpush.msra.mxu0 0.0
    %326 = vmatpush.msra.mxu0 0.0
    %327 = vmatpush.msra.mxu0 0.0
    %328 = vmatpush.msra.mxu0 0.0
    %329 = vmatpush.msra.mxu0 0.0
    %330 = vmatpush.msra.mxu0 0.0
    %331 = vmatpush.msra.mxu0 0.0
    %332 = vmatpush.msra.mxu0 0.0
    %333 = vmatpush.msra.mxu0 0.0
    %334 = vmatpush.msra.mxu0 0.0
    %335 = vmatpush.msra.mxu0 0.0
    %336 = vmatpush.msra.mxu0 0.0
    %337 = vmatpush.msra.mxu0 %v227
    %338 = vmatmul.f32.gmra.mxu0 %v320
    %v339 = vpop.f32.mrf.mxu0
    %v340 = vadd.f32 0.0, %v339
    %341 = vdwg.mxu0
    %v342 = vsel %vm275, %v134, 0
    %344 = vmatpush.msra.mxu0 0.0
    %345 = vmatpush.msra.mxu0 0.0
    %346 = vmatpush.msra.mxu0 0.0
    %347 = vmatpush.msra.mxu0 0.0
    %348 = vmatpush.msra.mxu0 0.0
    %349 = vmatpush.msra.mxu0 0.0
    %350 = vmatpush.msra.mxu0 0.0
    %351 = vmatpush.msra.mxu0 0.0
    %352 = vmatpush.msra.mxu0 0.0
    %353 = vmatpush.msra.mxu0 0.0
    %354 = vmatpush.msra.mxu0 0.0
    %355 = vmatpush.msra.mxu0 0.0
    %356 = vmatpush.msra.mxu0 0.0
    %357 = vmatpush.msra.mxu0 0.0
    %358 = vmatpush.msra.mxu0 0.0
    %359 = vmatpush.msra.mxu0 %v259
    %360 = vmatmul.f32.gmra.mxu0 %v342
    %v361 = vpop.f32.mrf.mxu0
    %v362 = vadd.f32 0.0, %v361
    %363 = vdwg.mxu0
    %v364 = vmul.f32 %v296, 0.35355338
    %v365 = vmul.f32 %v318, 0.35355338
    %v366 = vmul.f32 %v340, 0.35355338
    %v367 = vmul.f32 %v362, 0.35355338
    %v368 = vsel %vm127, 1, 0
    %vm369 = vcmp.eq.s32.totalorder %v368, 1
    %v370 = vsel %vm369, %v364, -1e+30
    %v371 = vsel %vm369, %v365, -1e+30
    %v372 = vsel %vm369, %v366, -1e+30
    %v373 = vsel %vm369, %v367, -1e+30
    %v374 = vsel %vm275, %v370, -inf
    %375 = vmax.xlane.f32.xlu0 %v374
    %v376 = vpop.xlane.xlu0 %375
    %v377 = vsel %vm275, %v371, -inf
    %378 = vmax.xlane.f32.xlu0 %v377
    %v379 = vpop.xlane.xlu0 %378
    %v380 = vsel %vm275, %v372, -inf
    %381 = vmax.xlane.f32.xlu0 %v380
    %v382 = vpop.xlane.xlu0 %381
    %v383 = vsel %vm275, %v373, -inf
    %384 = vmax.xlane.f32.xlu0 %v383
    %v385 = vpop.xlane.xlu0 %384
    %v386 = vsub.f32 %v370, %v376
    %v387 = vsub.f32 %v371, %v379
    %v388 = vsub.f32 %v372, %v382
    %v389 = vsub.f32 %v373, %v385
    %v390 = vmul.f32 %v386, 1.442695
    %v391 = vpow.pop %v390
    %v392 = vmul.f32 %v387, 1.442695
    %v393 = vpow.pop %v392
    %v394 = vmul.f32 %v388, 1.442695
    %v395 = vpow.pop %v394
    %v396 = vmul.f32 %v389, 1.442695
    %v397 = vpow.pop %v396
    %v398 = vsel %vm275, %v391, 0.0
    %399 = vadd.xlane.f32.xlu0 %v398
    %v400 = vpop.xlane.xlu0 %399
    %v401 = vsel %vm275, %v393, 0.0
    %402 = vadd.xlane.f32.xlu0 %v401
    %v403 = vpop.xlane.xlu0 %402
    %v404 = vsel %vm275, %v395, 0.0
    %405 = vadd.xlane.f32.xlu0 %v404
    %v406 = vpop.xlane.xlu0 %405
    %v407 = vsel %vm275, %v397, 0.0
    %408 = vadd.xlane.f32.xlu0 %v407
    %v409 = vpop.xlane.xlu0 %408
    %v410 = vrcp.pop %v400
    %v411 = vmul.f32 %v400, %v410
    %v412 = vsub.f32 1.0, %v411
    %v413 = vmul.f32 %v410, %v412
    %v414 = vadd.f32 %v410, %v413
    %vm415 = vweird.f32 %v400
    %vm416 = vweird.f32 %v410
    %vm417 = vmor %vm415, %vm416
    %v418 = vsel %vm417, %v410, %v414
    %v419 = vand.u32 2147483647, %v400
    %vm420 = vcmp.eq.f32.partialorder %v419, 8.507059e+37
    %v421 = vand.u32 %v400, 2147483648
    %v422 = vor.u32 1.1754944e-38, %v421
    %v423 = vsel %vm420, %v422, %v418
    %v424 = vrcp.pop %v403
    %v425 = vmul.f32 %v403, %v424
    %v426 = vsub.f32 1.0, %v425
    %v427 = vmul.f32 %v424, %v426
    %v428 = vadd.f32 %v424, %v427
    %vm429 = vweird.f32 %v403
    %vm430 = vweird.f32 %v424
    %vm431 = vmor %vm429, %vm430
    %v432 = vsel %vm431, %v424, %v428
    %v433 = vand.u32 2147483647, %v403
    %vm434 = vcmp.eq.f32.partialorder %v433, 8.507059e+37
    %v435 = vand.u32 %v403, 2147483648
    %v436 = vor.u32 1.1754944e-38, %v435
    %v437 = vsel %vm434, %v436, %v432
    %v438 = vrcp.pop %v406
    %v439 = vmul.f32 %v406, %v438
    %v440 = vsub.f32 1.0, %v439
    %v441 = vmul.f32 %v438, %v440
    %v442 = vadd.f32 %v438, %v441
    %vm443 = vweird.f32 %v406
    %vm444 = vweird.f32 %v438
    %vm445 = vmor %vm443, %vm444
    %v446 = vsel %vm445, %v438, %v442
    %v447 = vand.u32 2147483647, %v406
    %vm448 = vcmp.eq.f32.partialorder %v447, 8.507059e+37
    %v449 = vand.u32 %v406, 2147483648
    %v450 = vor.u32 1.1754944e-38, %v449
    %v451 = vsel %vm448, %v450, %v446
    %v452 = vrcp.pop %v409
    %v453 = vmul.f32 %v409, %v452
    %v454 = vsub.f32 1.0, %v453
    %v455 = vmul.f32 %v452, %v454
    %v456 = vadd.f32 %v452, %v455
    %vm457 = vweird.f32 %v409
    %vm458 = vweird.f32 %v452
    %vm459 = vmor %vm457, %vm458
    %v460 = vsel %vm459, %v452, %v456
    %v461 = vand.u32 2147483647, %v409
    %vm462 = vcmp.eq.f32.partialorder %v461, 8.507059e+37
    %v463 = vand.u32 %v409, 2147483648
    %v464 = vor.u32 1.1754944e-38, %v463
    %v465 = vsel %vm462, %v464, %v460
    %v466 = vmul.f32 %v391, %v423
    %v467 = vmul.f32 %v393, %v437
    %v468 = vmul.f32 %v395, %v451
    %v469 = vmul.f32 %v397, %v465
    %470 = vrot.lane.b32.xlu0 %v118, 64
    %v471 = vpop.permute.xlu0 %470
    %472 = vrot.lane.b32.xlu0 %v130, 64
    %v473 = vpop.permute.xlu0 %472
    %474 = vrot.lane.b32.xlu0 %v132, 64
    %v475 = vpop.permute.xlu0 %474
    %476 = vrot.lane.b32.xlu0 %v134, 64
    %v477 = vpop.permute.xlu0 %476
    %482 = vxpose.xlu0.b32.start [1/16] %v471, 128
    %483 = vxpose.xlu0.b32.cont [2/16] 0.0, 128
    %484 = vxpose.xlu0.b32.cont [3/16] 0.0, 128
    %485 = vxpose.xlu0.b32.cont [4/16] 0.0, 128
    %486 = vxpose.xlu0.b32.cont [5/16] 0.0, 128
    %487 = vxpose.xlu0.b32.cont [6/16] 0.0, 128
    %488 = vxpose.xlu0.b32.cont [7/16] 0.0, 128
    %489 = vxpose.xlu0.b32.cont [8/16] 0.0, 128
    %490 = vxpose.xlu0.b32.cont [9/16] 0.0, 128
    %491 = vxpose.xlu0.b32.cont [10/16] 0.0, 128
    %492 = vxpose.xlu0.b32.cont [11/16] 0.0, 128
    %493 = vxpose.xlu0.b32.cont [12/16] 0.0, 128
    %494 = vxpose.xlu0.b32.cont [13/16] 0.0, 128
    %495 = vxpose.xlu0.b32.cont [14/16] 0.0, 128
    %496 = vxpose.xlu0.b32.cont [15/16] 0.0, 128
    %497 = vxpose.xlu0.b32.end [16/16] 0.0, 128
    %v498 = vpop.trf.xlu0
    %v499 = vpop.trf.xlu0
    %v500 = vpop.trf.xlu0
    %v501 = vpop.trf.xlu0
    %v502 = vpop.trf.xlu0
    %v503 = vpop.trf.xlu0
    %v504 = vpop.trf.xlu0
    %v505 = vpop.trf.xlu0
    %v506 = vpop.trf.xlu0
    %v507 = vpop.trf.xlu0
    %v508 = vpop.trf.xlu0
    %v509 = vpop.trf.xlu0
    %v510 = vpop.trf.xlu0
    %v511 = vpop.trf.xlu0
    %v512 = vpop.trf.xlu0
    %v513 = vpop.trf.xlu0
    %514 = vxpose.xlu0.b32.start [1/16] %v473, 128
    %515 = vxpose.xlu0.b32.cont [2/16] 0.0, 128
    %516 = vxpose.xlu0.b32.cont [3/16] 0.0, 128
    %517 = vxpose.xlu0.b32.cont [4/16] 0.0, 128
    %518 = vxpose.xlu0.b32.cont [5/16] 0.0, 128
    %519 = vxpose.xlu0.b32.cont [6/16] 0.0, 128
    %520 = vxpose.xlu0.b32.cont [7/16] 0.0, 128
    %521 = vxpose.xlu0.b32.cont [8/16] 0.0, 128
    %522 = vxpose.xlu0.b32.cont [9/16] 0.0, 128
    %523 = vxpose.xlu0.b32.cont [10/16] 0.0, 128
    %524 = vxpose.xlu0.b32.cont [11/16] 0.0, 128
    %525 = vxpose.xlu0.b32.cont [12/16] 0.0, 128
    %526 = vxpose.xlu0.b32.cont [13/16] 0.0, 128
    %527 = vxpose.xlu0.b32.cont [14/16] 0.0, 128
    %528 = vxpose.xlu0.b32.cont [15/16] 0.0, 128
    %529 = vxpose.xlu0.b32.end [16/16] 0.0, 128
    %v530 = vpop.trf.xlu0
    %v531 = vpop.trf.xlu0
    %v532 = vpop.trf.xlu0
    %v533 = vpop.trf.xlu0
    %v534 = vpop.trf.xlu0
    %v535 = vpop.trf.xlu0
    %v536 = vpop.trf.xlu0
    %v537 = vpop.trf.xlu0
    %v538 = vpop.trf.xlu0
    %v539 = vpop.trf.xlu0
    %v540 = vpop.trf.xlu0
    %v541 = vpop.trf.xlu0
    %v542 = vpop.trf.xlu0
    %v543 = vpop.trf.xlu0
    %v544 = vpop.trf.xlu0
    %v545 = vpop.trf.xlu0
    %546 = vxpose.xlu0.b32.start [1/16] %v475, 128
    %547 = vxpose.xlu0.b32.cont [2/16] 0.0, 128
    %548 = vxpose.xlu0.b32.cont [3/16] 0.0, 128
    %549 = vxpose.xlu0.b32.cont [4/16] 0.0, 128
    %550 = vxpose.xlu0.b32.cont [5/16] 0.0, 128
    %551 = vxpose.xlu0.b32.cont [6/16] 0.0, 128
    %552 = vxpose.xlu0.b32.cont [7/16] 0.0, 128
    %553 = vxpose.xlu0.b32.cont [8/16] 0.0, 128
    %554 = vxpose.xlu0.b32.cont [9/16] 0.0, 128
    %555 = vxpose.xlu0.b32.cont [10/16] 0.0, 128
    %556 = vxpose.xlu0.b32.cont [11/16] 0.0, 128
    %557 = vxpose.xlu0.b32.cont [12/16] 0.0, 128
    %558 = vxpose.xlu0.b32.cont [13/16] 0.0, 128
    %559 = vxpose.xlu0.b32.cont [14/16] 0.0, 128
    %560 = vxpose.xlu0.b32.cont [15/16] 0.0, 128
    %561 = vxpose.xlu0.b32.end [16/16] 0.0, 128
    %v562 = vpop.trf.xlu0
    %v563 = vpop.trf.xlu0
    %v564 = vpop.trf.xlu0
    %v565 = vpop.trf.xlu0
    %v566 = vpop.trf.xlu0
    %v567 = vpop.trf.xlu0
    %v568 = vpop.trf.xlu0
    %v569 = vpop.trf.xlu0
    %v570 = vpop.trf.xlu0
    %v571 = vpop.trf.xlu0
    %v572 = vpop.trf.xlu0
    %v573 = vpop.trf.xlu0
    %v574 = vpop.trf.xlu0
    %v575 = vpop.trf.xlu0
    %v576 = vpop.trf.xlu0
    %v577 = vpop.trf.xlu0
    %578 = vxpose.xlu0.b32.start [1/16] %v477, 128
    %579 = vxpose.xlu0.b32.cont [2/16] 0.0, 128
    %580 = vxpose.xlu0.b32.cont [3/16] 0.0, 128
    %581 = vxpose.xlu0.b32.cont [4/16] 0.0, 128
    %582 = vxpose.xlu0.b32.cont [5/16] 0.0, 128
    %583 = vxpose.xlu0.b32.cont [6/16] 0.0, 128
    %584 = vxpose.xlu0.b32.cont [7/16] 0.0, 128
    %585 = vxpose.xlu0.b32.cont [8/16] 0.0, 128
    %586 = vxpose.xlu0.b32.cont [9/16] 0.0, 128
    %587 = vxpose.xlu0.b32.cont [10/16] 0.0, 128
    %588 = vxpose.xlu0.b32.cont [11/16] 0.0, 128
    %589 = vxpose.xlu0.b32.cont [12/16] 0.0, 128
    %590 = vxpose.xlu0.b32.cont [13/16] 0.0, 128
    %591 = vxpose.xlu0.b32.cont [14/16] 0.0, 128
    %592 = vxpose.xlu0.b32.cont [15/16] 0.0, 128
    %593 = vxpose.xlu0.b32.end [16/16] 0.0, 128
    %v594 = vpop.trf.xlu0
    %v595 = vpop.trf.xlu0
    %v596 = vpop.trf.xlu0
    %v597 = vpop.trf.xlu0
    %v598 = vpop.trf.xlu0
    %v599 = vpop.trf.xlu0
    %v600 = vpop.trf.xlu0
    %v601 = vpop.trf.xlu0
    %v602 = vpop.trf.xlu0
    %v603 = vpop.trf.xlu0
    %v604 = vpop.trf.xlu0
    %v605 = vpop.trf.xlu0
    %v606 = vpop.trf.xlu0
    %v607 = vpop.trf.xlu0
    %v608 = vpop.trf.xlu0
    %v609 = vpop.trf.xlu0
    %v611 = vsel %vm275, %v498, 0
    %v614 = vsel %vm275, %v466, 0
    %616 = vmatpush.xpose.msra.mxu0 0.0
    %617 = vmatpush.xpose.msra.mxu0 0.0
    %618 = vmatpush.xpose.msra.mxu0 0.0
    %619 = vmatpush.xpose.msra.mxu0 0.0
    %620 = vmatpush.xpose.msra.mxu0 0.0
    %621 = vmatpush.xpose.msra.mxu0 0.0
    %622 = vmatpush.xpose.msra.mxu0 0.0
    %623 = vmatpush.xpose.msra.mxu0 0.0
    %624 = vmatpush.xpose.msra.mxu0 0.0
    %625 = vmatpush.xpose.msra.mxu0 0.0
    %626 = vmatpush.xpose.msra.mxu0 0.0
    %627 = vmatpush.xpose.msra.mxu0 0.0
    %628 = vmatpush.xpose.msra.mxu0 0.0
    %629 = vmatpush.xpose.msra.mxu0 0.0
    %630 = vmatpush.xpose.msra.mxu0 0.0
    %631 = vmatpush.xpose.msra.mxu0 %v614
    %632 = vmatmul.f32.gmra.mxu0 %v611
    %v633 = vpop.f32.mrf.mxu0
    %v634 = vadd.f32 0.0, %v633
    %635 = vdwg.mxu0
    %v637 = vsel %vm275, %v530, 0
    %v640 = vsel %vm275, %v467, 0
    %642 = vmatpush.xpose.msra.mxu0 0.0
    %643 = vmatpush.xpose.msra.mxu0 0.0
    %644 = vmatpush.xpose.msra.mxu0 0.0
    %645 = vmatpush.xpose.msra.mxu0 0.0
    %646 = vmatpush.xpose.msra.mxu0 0.0
    %647 = vmatpush.xpose.msra.mxu0 0.0
    %648 = vmatpush.xpose.msra.mxu0 0.0
    %649 = vmatpush.xpose.msra.mxu0 0.0
    %650 = vmatpush.xpose.msra.mxu0 0.0
    %651 = vmatpush.xpose.msra.mxu0 0.0
    %652 = vmatpush.xpose.msra.mxu0 0.0
    %653 = vmatpush.xpose.msra.mxu0 0.0
    %654 = vmatpush.xpose.msra.mxu0 0.0
    %655 = vmatpush.xpose.msra.mxu0 0.0
    %656 = vmatpush.xpose.msra.mxu0 0.0
    %657 = vmatpush.xpose.msra.mxu0 %v640
    %658 = vmatmul.f32.gmra.mxu0 %v637
    %v659 = vpop.f32.mrf.mxu0
    %v660 = vadd.f32 0.0, %v659
    %661 = vdwg.mxu0
    %v663 = vsel %vm275, %v562, 0
    %v666 = vsel %vm275, %v468, 0
    %668 = vmatpush.xpose.msra.mxu0 0.0
    %669 = vmatpush.xpose.msra.mxu0 0.0
    %670 = vmatpush.xpose.msra.mxu0 0.0
    %671 = vmatpush.xpose.msra.mxu0 0.0
    %672 = vmatpush.xpose.msra.mxu0 0.0
    %673 = vmatpush.xpose.msra.mxu0 0.0
    %674 = vmatpush.xpose.msra.mxu0 0.0
    %675 = vmatpush.xpose.msra.mxu0 0.0
    %676 = vmatpush.xpose.msra.mxu0 0.0
    %677 = vmatpush.xpose.msra.mxu0 0.0
    %678 = vmatpush.xpose.msra.mxu0 0.0
    %679 = vmatpush.xpose.msra.mxu0 0.0
    %680 = vmatpush.xpose.msra.mxu0 0.0
    %681 = vmatpush.xpose.msra.mxu0 0.0
    %682 = vmatpush.xpose.msra.mxu0 0.0
    %683 = vmatpush.xpose.msra.mxu0 %v666
    %684 = vmatmul.f32.gmra.mxu0 %v663
    %v685 = vpop.f32.mrf.mxu0
    %v686 = vadd.f32 0.0, %v685
    %687 = vdwg.mxu0
    %v689 = vsel %vm275, %v594, 0
    %v692 = vsel %vm275, %v469, 0
    %694 = vmatpush.xpose.msra.mxu0 0.0
    %695 = vmatpush.xpose.msra.mxu0 0.0
    %696 = vmatpush.xpose.msra.mxu0 0.0
    %697 = vmatpush.xpose.msra.mxu0 0.0
    %698 = vmatpush.xpose.msra.mxu0 0.0
    %699 = vmatpush.xpose.msra.mxu0 0.0
    %700 = vmatpush.xpose.msra.mxu0 0.0
    %701 = vmatpush.xpose.msra.mxu0 0.0
    %702 = vmatpush.xpose.msra.mxu0 0.0
    %703 = vmatpush.xpose.msra.mxu0 0.0
    %704 = vmatpush.xpose.msra.mxu0 0.0
    %705 = vmatpush.xpose.msra.mxu0 0.0
    %706 = vmatpush.xpose.msra.mxu0 0.0
    %707 = vmatpush.xpose.msra.mxu0 0.0
    %708 = vmatpush.xpose.msra.mxu0 0.0
    %709 = vmatpush.xpose.msra.mxu0 %v692
    %710 = vmatmul.f32.gmra.mxu0 %v689
    %v711 = vpop.f32.mrf.mxu0
    %v712 = vadd.f32 0.0, %v711
    %713 = vdwg.mxu0
    %714 = vxpose.xlu0.b32.start [1/16] %v634, 128
    %715 = vxpose.xlu0.b32.cont [2/16] 0.0, 128
    %716 = vxpose.xlu0.b32.cont [3/16] 0.0, 128
    %717 = vxpose.xlu0.b32.cont [4/16] 0.0, 128
    %718 = vxpose.xlu0.b32.cont [5/16] 0.0, 128
    %719 = vxpose.xlu0.b32.cont [6/16] 0.0, 128
    %720 = vxpose.xlu0.b32.cont [7/16] 0.0, 128
    %721 = vxpose.xlu0.b32.cont [8/16] 0.0, 128
    %722 = vxpose.xlu0.b32.cont [9/16] 0.0, 128
    %723 = vxpose.xlu0.b32.cont [10/16] 0.0, 128
    %724 = vxpose.xlu0.b32.cont [11/16] 0.0, 128
    %725 = vxpose.xlu0.b32.cont [12/16] 0.0, 128
    %726 = vxpose.xlu0.b32.cont [13/16] 0.0, 128
    %727 = vxpose.xlu0.b32.cont [14/16] 0.0, 128
    %728 = vxpose.xlu0.b32.cont [15/16] 0.0, 128
    %729 = vxpose.xlu0.b32.end [16/16] 0.0, 128
    %v730 = vpop.trf.xlu0
    %v731 = vpop.trf.xlu0
    %v732 = vpop.trf.xlu0
    %v733 = vpop.trf.xlu0
    %v734 = vpop.trf.xlu0
    %v735 = vpop.trf.xlu0
    %v736 = vpop.trf.xlu0
    %v737 = vpop.trf.xlu0
    %v738 = vpop.trf.xlu0
    %v739 = vpop.trf.xlu0
    %v740 = vpop.trf.xlu0
    %v741 = vpop.trf.xlu0
    %v742 = vpop.trf.xlu0
    %v743 = vpop.trf.xlu0
    %v744 = vpop.trf.xlu0
    %v745 = vpop.trf.xlu0
    %746 = vxpose.xlu0.b32.start [1/16] %v660, 128
    %747 = vxpose.xlu0.b32.cont [2/16] 0.0, 128
    %748 = vxpose.xlu0.b32.cont [3/16] 0.0, 128
    %749 = vxpose.xlu0.b32.cont [4/16] 0.0, 128
    %750 = vxpose.xlu0.b32.cont [5/16] 0.0, 128
    %751 = vxpose.xlu0.b32.cont [6/16] 0.0, 128
    %752 = vxpose.xlu0.b32.cont [7/16] 0.0, 128
    %753 = vxpose.xlu0.b32.cont [8/16] 0.0, 128
    %754 = vxpose.xlu0.b32.cont [9/16] 0.0, 128
    %755 = vxpose.xlu0.b32.cont [10/16] 0.0, 128
    %756 = vxpose.xlu0.b32.cont [11/16] 0.0, 128
    %757 = vxpose.xlu0.b32.cont [12/16] 0.0, 128
    %758 = vxpose.xlu0.b32.cont [13/16] 0.0, 128
    %759 = vxpose.xlu0.b32.cont [14/16] 0.0, 128
    %760 = vxpose.xlu0.b32.cont [15/16] 0.0, 128
    %761 = vxpose.xlu0.b32.end [16/16] 0.0, 128
    %v762 = vpop.trf.xlu0
    %v763 = vpop.trf.xlu0
    %v764 = vpop.trf.xlu0
    %v765 = vpop.trf.xlu0
    %v766 = vpop.trf.xlu0
    %v767 = vpop.trf.xlu0
    %v768 = vpop.trf.xlu0
    %v769 = vpop.trf.xlu0
    %v770 = vpop.trf.xlu0
    %v771 = vpop.trf.xlu0
    %v772 = vpop.trf.xlu0
    %v773 = vpop.trf.xlu0
    %v774 = vpop.trf.xlu0
    %v775 = vpop.trf.xlu0
    %v776 = vpop.trf.xlu0
    %v777 = vpop.trf.xlu0
    %778 = vxpose.xlu0.b32.start [1/16] %v686, 128
    %779 = vxpose.xlu0.b32.cont [2/16] 0.0, 128
    %780 = vxpose.xlu0.b32.cont [3/16] 0.0, 128
    %781 = vxpose.xlu0.b32.cont [4/16] 0.0, 128
    %782 = vxpose.xlu0.b32.cont [5/16] 0.0, 128
    %783 = vxpose.xlu0.b32.cont [6/16] 0.0, 128
    %784 = vxpose.xlu0.b32.cont [7/16] 0.0, 128
    %785 = vxpose.xlu0.b32.cont [8/16] 0.0, 128
    %786 = vxpose.xlu0.b32.cont [9/16] 0.0, 128
    %787 = vxpose.xlu0.b32.cont [10/16] 0.0, 128
    %788 = vxpose.xlu0.b32.cont [11/16] 0.0, 128
    %789 = vxpose.xlu0.b32.cont [12/16] 0.0, 128
    %790 = vxpose.xlu0.b32.cont [13/16] 0.0, 128
    %791 = vxpose.xlu0.b32.cont [14/16] 0.0, 128
    %792 = vxpose.xlu0.b32.cont [15/16] 0.0, 128
    %793 = vxpose.xlu0.b32.end [16/16] 0.0, 128
    %v794 = vpop.trf.xlu0
    %v795 = vpop.trf.xlu0
    %v796 = vpop.trf.xlu0
    %v797 = vpop.trf.xlu0
    %v798 = vpop.trf.xlu0
    %v799 = vpop.trf.xlu0
    %v800 = vpop.trf.xlu0
    %v801 = vpop.trf.xlu0
    %v802 = vpop.trf.xlu0
    %v803 = vpop.trf.xlu0
    %v804 = vpop.trf.xlu0
    %v805 = vpop.trf.xlu0
    %v806 = vpop.trf.xlu0
    %v807 = vpop.trf.xlu0
    %v808 = vpop.trf.xlu0
    %v809 = vpop.trf.xlu0
    %810 = vxpose.xlu0.b32.start [1/16] %v712, 128
    %811 = vxpose.xlu0.b32.cont [2/16] 0.0, 128
    %812 = vxpose.xlu0.b32.cont [3/16] 0.0, 128
    %813 = vxpose.xlu0.b32.cont [4/16] 0.0, 128
    %814 = vxpose.xlu0.b32.cont [5/16] 0.0, 128
    %815 = vxpose.xlu0.b32.cont [6/16] 0.0, 128
    %816 = vxpose.xlu0.b32.cont [7/16] 0.0, 128
    %817 = vxpose.xlu0.b32.cont [8/16] 0.0, 128
    %818 = vxpose.xlu0.b32.cont [9/16] 0.0, 128
    %819 = vxpose.xlu0.b32.cont [10/16] 0.0, 128
    %820 = vxpose.xlu0.b32.cont [11/16] 0.0, 128
    %821 = vxpose.xlu0.b32.cont [12/16] 0.0, 128
    %822 = vxpose.xlu0.b32.cont [13/16] 0.0, 128
    %823 = vxpose.xlu0.b32.cont [14/16] 0.0, 128
    %824 = vxpose.xlu0.b32.cont [15/16] 0.0, 128
    %825 = vxpose.xlu0.b32.end [16/16] 0.0, 128
    %v826 = vpop.trf.xlu0
    %v827 = vpop.trf.xlu0
    %v828 = vpop.trf.xlu0
    %v829 = vpop.trf.xlu0
    %v830 = vpop.trf.xlu0
    %v831 = vpop.trf.xlu0
    %v832 = vpop.trf.xlu0
    %v833 = vpop.trf.xlu0
    %v834 = vpop.trf.xlu0
    %v835 = vpop.trf.xlu0
    %v836 = vpop.trf.xlu0
    %v837 = vpop.trf.xlu0
    %v838 = vpop.trf.xlu0
    %v839 = vpop.trf.xlu0
    %v840 = vpop.trf.xlu0
    %v841 = vpop.trf.xlu0
    %v842 = vrot.slane %v794, 4
    %vm843 = vcmask 1047556
    %v844 = vsel %vm843, %v842, %v730
    %v845 = vrot.slane %v730, 4
    %v846 = vsel %vm843, %v794, %v845
    %v848 = vunpack.c.l.s4 1983009808
    %v849 = vunpack.c.0.s8 %v848
    %v850 = vperm.slane %v844, %v849
    %v852 = vunpack.c.l.s4 1983009808
    %v853 = vunpack.c.0.s8 %v852
    %v854 = vperm.slane %v846, %v853
    %v855 = vrot.slane %v826, 4
    %v856 = vsel %vm843, %v855, %v762
    %v857 = vrot.slane %v762, 4
    %v858 = vsel %vm843, %v826, %v857
    %v860 = vunpack.c.l.s4 1983009808
    %v861 = vunpack.c.0.s8 %v860
    %v862 = vperm.slane %v856, %v861
    %v864 = vunpack.c.l.s4 1983009808
    %v865 = vunpack.c.0.s8 %v864
    %v866 = vperm.slane %v858, %v865
    %v867 = vrot.slane %v862, 4
    %v868 = vsel %vm843, %v867, %v850
    %v869 = vrot.slane %v850, 4
    %v870 = vsel %vm843, %v862, %v869
    %v872 = vunpack.c.l.s4 1934713408
    %v873 = vunpack.c.0.s8 %v872
    %v874 = vperm.slane %v868, %v873
    %v876 = vunpack.c.l.s4 1934713408
    %v877 = vunpack.c.0.s8 %v876
    %v878 = vperm.slane %v870, %v877
    %v879 = vrot.slane %v866, 4
    %v880 = vsel %vm843, %v879, %v854
    %v881 = vrot.slane %v854, 4
    %v882 = vsel %vm843, %v866, %v881
    %v884 = vunpack.c.l.s4 1934713408
    %v885 = vunpack.c.0.s8 %v884
    %v886 = vperm.slane %v880, %v885
    %v888 = vunpack.c.l.s4 1934713408
    %v889 = vunpack.c.0.s8 %v888
    %v890 = vperm.slane %v882, %v889
    %v891 = vrot.slane %v874, 4
    %v892 = vsel %vm843, 0.0, %v891
    %v893 = vrot.slane %v878, 4
    %v894 = vsel %vm843, 0.0, %v893
    %v895 = vrot.slane %v886, 4
    %v896 = vsel %vm843, 0.0, %v895
    %v897 = vrot.slane %v890, 4
    %v898 = vsel %vm843, 0.0, %v897
    %v899 = vsel %vm843, %v893, %v874
    %v901 = vunpack.c.l.s4 1983009808
    %v902 = vunpack.c.0.s8 %v901
    %v903 = vperm.slane %v899, %v902
    %v904 = vrot.slane %v894, 4
    %v905 = vsel %vm843, %v904, %v892
    %v907 = vunpack.c.l.s4 1983009808
    %v908 = vunpack.c.0.s8 %v907
    %v909 = vperm.slane %v905, %v908
    %v910 = vsel %vm843, %v897, %v886
    %v912 = vunpack.c.l.s4 1983009808
    %v913 = vunpack.c.0.s8 %v912
    %v914 = vperm.slane %v910, %v913
    %v915 = vrot.slane %v898, 4
    %v916 = vsel %vm843, %v915, %v896
    %v918 = vunpack.c.l.s4 1983009808
    %v919 = vunpack.c.0.s8 %v918
    %v920 = vperm.slane %v916, %v919
    %v921 = vrot.slane %v909, 4
    %v922 = vsel %vm843, %v921, %v903
    %v923 = vrot.slane %v903, 4
    %v924 = vsel %vm843, %v909, %v923
    %v926 = vunpack.c.l.s4 1934713408
    %v927 = vunpack.c.0.s8 %v926
    %v928 = vperm.slane %v922, %v927
    %v930 = vunpack.c.l.s4 1934713408
    %v931 = vunpack.c.0.s8 %v930
    %v932 = vperm.slane %v924, %v931
    %v933 = vrot.slane %v920, 4
    %v934 = vsel %vm843, %v933, %v914
    %v935 = vrot.slane %v914, 4
    %v936 = vsel %vm843, %v920, %v935
    %v938 = vunpack.c.l.s4 1934713408
    %v939 = vunpack.c.0.s8 %v938
    %v940 = vperm.slane %v934, %v939
    %v942 = vunpack.c.l.s4 1934713408
    %v943 = vunpack.c.0.s8 %v942
    %v944 = vperm.slane %v936, %v943
    %v945 = vrot.slane %v940, 4
    %v946 = vsel %vm843, %v945, %v928
    %v947 = vrot.slane %v928, 4
    %v948 = vsel %vm843, %v940, %v947
    %v949 = vrot.slane %v944, 4
    %v950 = vsel %vm843, %v949, %v932
    %v951 = vrot.slane %v932, 4
    %v952 = vsel %vm843, %v944, %v951
    %954 = vrot.lane.b32.xlu0 %v948, 8
    %v955 = vpop.permute.xlu0 %954
    %958 = vrot.lane.b32.xlu0 %v950, 16
    %v959 = vpop.permute.xlu0 %958
    %962 = vrot.lane.b32.xlu0 %v952, 24
    %v963 = vpop.permute.xlu0 %962
    %v965 = vsel %vm275, %v946, %v955
    %vm966 = vcmask 130048
    %v967 = vsel %vm966, %v965, %v959
    %vm968 = vcmask 195584
    %v969 = vsel %vm968, %v967, %v963
    %971 = vrot.lane.b32.xlu0 %v121, 120
    %v972 = vpop.permute.xlu0 %971
    %973 = vrot.lane.b32.xlu0 %v121, 112
    %v974 = vpop.permute.xlu0 %973
    %975 = vrot.lane.b32.xlu0 %v121, 104
    %v976 = vpop.permute.xlu0 %975
    %977 = vrot.lane.b32.xlu0 %v121, 96
    %v978 = vpop.permute.xlu0 %977
    %979 = vrot.lane.b32.xlu0 %v972, 96
    %v980 = vpop.permute.xlu0 %979
    %981 = vrot.lane.b32.xlu0 %v974, 96
    %v982 = vpop.permute.xlu0 %981
    %983 = vrot.lane.b32.xlu0 %v976, 96
    %v984 = vpop.permute.xlu0 %983
    %989 = vxpose.xlu0.b32.start [1/16] %v978, 128
    %990 = vxpose.xlu0.b32.cont [2/16] 0.0, 128
    %991 = vxpose.xlu0.b32.cont [3/16] 0.0, 128
    %992 = vxpose.xlu0.b32.cont [4/16] 0.0, 128
    %993 = vxpose.xlu0.b32.cont [5/16] 0.0, 128
    %994 = vxpose.xlu0.b32.cont [6/16] 0.0, 128
    %995 = vxpose.xlu0.b32.cont [7/16] 0.0, 128
    %996 = vxpose.xlu0.b32.cont [8/16] 0.0, 128
    %997 = vxpose.xlu0.b32.cont [9/16] 0.0, 128
    %998 = vxpose.xlu0.b32.cont [10/16] 0.0, 128
    %999 = vxpose.xlu0.b32.cont [11/16] 0.0, 128
    %1000 = vxpose.xlu0.b32.cont [12/16] 0.0, 128
    %1001 = vxpose.xlu0.b32.cont [13/16] 0.0, 128
    %1002 = vxpose.xlu0.b32.cont [14/16] 0.0, 128
    %1003 = vxpose.xlu0.b32.cont [15/16] 0.0, 128
    %1004 = vxpose.xlu0.b32.end [16/16] 0.0, 128
    %v1005 = vpop.trf.xlu0
    %v1006 = vpop.trf.xlu0
    %v1007 = vpop.trf.xlu0
    %v1008 = vpop.trf.xlu0
    %v1009 = vpop.trf.xlu0
    %v1010 = vpop.trf.xlu0
    %v1011 = vpop.trf.xlu0
    %v1012 = vpop.trf.xlu0
    %v1013 = vpop.trf.xlu0
    %v1014 = vpop.trf.xlu0
    %v1015 = vpop.trf.xlu0
    %v1016 = vpop.trf.xlu0
    %v1017 = vpop.trf.xlu0
    %v1018 = vpop.trf.xlu0
    %v1019 = vpop.trf.xlu0
    %v1020 = vpop.trf.xlu0
    %1021 = vxpose.xlu0.b32.start [1/16] %v980, 128
    %1022 = vxpose.xlu0.b32.cont [2/16] 0.0, 128
    %1023 = vxpose.xlu0.b32.cont [3/16] 0.0, 128
    %1024 = vxpose.xlu0.b32.cont [4/16] 0.0, 128
    %1025 = vxpose.xlu0.b32.cont [5/16] 0.0, 128
    %1026 = vxpose.xlu0.b32.cont [6/16] 0.0, 128
    %1027 = vxpose.xlu0.b32.cont [7/16] 0.0, 128
    %1028 = vxpose.xlu0.b32.cont [8/16] 0.0, 128
    %1029 = vxpose.xlu0.b32.cont [9/16] 0.0, 128
    %1030 = vxpose.xlu0.b32.cont [10/16] 0.0, 128
    %1031 = vxpose.xlu0.b32.cont [11/16] 0.0, 128
    %1032 = vxpose.xlu0.b32.cont [12/16] 0.0, 128
    %1033 = vxpose.xlu0.b32.cont [13/16] 0.0, 128
    %1034 = vxpose.xlu0.b32.cont [14/16] 0.0, 128
    %1035 = vxpose.xlu0.b32.cont [15/16] 0.0, 128
    %1036 = vxpose.xlu0.b32.end [16/16] 0.0, 128
    %v1037 = vpop.trf.xlu0
    %v1038 = vpop.trf.xlu0
    %v1039 = vpop.trf.xlu0
    %v1040 = vpop.trf.xlu0
    %v1041 = vpop.trf.xlu0
    %v1042 = vpop.trf.xlu0
    %v1043 = vpop.trf.xlu0
    %v1044 = vpop.trf.xlu0
    %v1045 = vpop.trf.xlu0
    %v1046 = vpop.trf.xlu0
    %v1047 = vpop.trf.xlu0
    %v1048 = vpop.trf.xlu0
    %v1049 = vpop.trf.xlu0
    %v1050 = vpop.trf.xlu0
    %v1051 = vpop.trf.xlu0
    %v1052 = vpop.trf.xlu0
    %1053 = vxpose.xlu0.b32.start [1/16] %v982, 128
    %1054 = vxpose.xlu0.b32.cont [2/16] 0.0, 128
    %1055 = vxpose.xlu0.b32.cont [3/16] 0.0, 128
    %1056 = vxpose.xlu0.b32.cont [4/16] 0.0, 128
    %1057 = vxpose.xlu0.b32.cont [5/16] 0.0, 128
    %1058 = vxpose.xlu0.b32.cont [6/16] 0.0, 128
    %1059 = vxpose.xlu0.b32.cont [7/16] 0.0, 128
    %1060 = vxpose.xlu0.b32.cont [8/16] 0.0, 128
    %1061 = vxpose.xlu0.b32.cont [9/16] 0.0, 128
    %1062 = vxpose.xlu0.b32.cont [10/16] 0.0, 128
    %1063 = vxpose.xlu0.b32.cont [11/16] 0.0, 128
    %1064 = vxpose.xlu0.b32.cont [12/16] 0.0, 128
    %1065 = vxpose.xlu0.b32.cont [13/16] 0.0, 128
    %1066 = vxpose.xlu0.b32.cont [14/16] 0.0, 128
    %1067 = vxpose.xlu0.b32.cont [15/16] 0.0, 128
    %1068 = vxpose.xlu0.b32.end [16/16] 0.0, 128
    %v1069 = vpop.trf.xlu0
    %v1070 = vpop.trf.xlu0
    %v1071 = vpop.trf.xlu0
    %v1072 = vpop.trf.xlu0
    %v1073 = vpop.trf.xlu0
    %v1074 = vpop.trf.xlu0
    %v1075 = vpop.trf.xlu0
    %v1076 = vpop.trf.xlu0
    %v1077 = vpop.trf.xlu0
    %v1078 = vpop.trf.xlu0
    %v1079 = vpop.trf.xlu0
    %v1080 = vpop.trf.xlu0
    %v1081 = vpop.trf.xlu0
    %v1082 = vpop.trf.xlu0
    %v1083 = vpop.trf.xlu0
    %v1084 = vpop.trf.xlu0
    %1085 = vxpose.xlu0.b32.start [1/16] %v984, 128
    %1086 = vxpose.xlu0.b32.cont [2/16] 0.0, 128
    %1087 = vxpose.xlu0.b32.cont [3/16] 0.0, 128
    %1088 = vxpose.xlu0.b32.cont [4/16] 0.0, 128
    %1089 = vxpose.xlu0.b32.cont [5/16] 0.0, 128
    %1090 = vxpose.xlu0.b32.cont [6/16] 0.0, 128
    %1091 = vxpose.xlu0.b32.cont [7/16] 0.0, 128
    %1092 = vxpose.xlu0.b32.cont [8/16] 0.0, 128
    %1093 = vxpose.xlu0.b32.cont [9/16] 0.0, 128
    %1094 = vxpose.xlu0.b32.cont [10/16] 0.0, 128
    %1095 = vxpose.xlu0.b32.cont [11/16] 0.0, 128
    %1096 = vxpose.xlu0.b32.cont [12/16] 0.0, 128
    %1097 = vxpose.xlu0.b32.cont [13/16] 0.0, 128
    %1098 = vxpose.xlu0.b32.cont [14/16] 0.0, 128
    %1099 = vxpose.xlu0.b32.cont [15/16] 0.0, 128
    %1100 = vxpose.xlu0.b32.end [16/16] 0.0, 128
    %v1101 = vpop.trf.xlu0
    %v1102 = vpop.trf.xlu0
    %v1103 = vpop.trf.xlu0
    %v1104 = vpop.trf.xlu0
    %v1105 = vpop.trf.xlu0
    %v1106 = vpop.trf.xlu0
    %v1107 = vpop.trf.xlu0
    %v1108 = vpop.trf.xlu0
    %v1109 = vpop.trf.xlu0
    %v1110 = vpop.trf.xlu0
    %v1111 = vpop.trf.xlu0
    %v1112 = vpop.trf.xlu0
    %v1113 = vpop.trf.xlu0
    %v1114 = vpop.trf.xlu0
    %v1115 = vpop.trf.xlu0
    %v1116 = vpop.trf.xlu0
    %v1117 = vsel %vm275, %v121, 0
    %1119 = vmatpush.msra.mxu0 0.0
    %1120 = vmatpush.msra.mxu0 0.0
    %1121 = vmatpush.msra.mxu0 0.0
    %1122 = vmatpush.msra.mxu0 0.0
    %1123 = vmatpush.msra.mxu0 0.0
    %1124 = vmatpush.msra.mxu0 0.0
    %1125 = vmatpush.msra.mxu0 0.0
    %1126 = vmatpush.msra.mxu0 0.0
    %1127 = vmatpush.msra.mxu0 0.0
    %1128 = vmatpush.msra.mxu0 0.0
    %1129 = vmatpush.msra.mxu0 0.0
    %1130 = vmatpush.msra.mxu0 0.0
    %1131 = vmatpush.msra.mxu0 0.0
    %1132 = vmatpush.msra.mxu0 0.0
    %1133 = vmatpush.msra.mxu0 0.0
    %1134 = vmatpush.msra.mxu0 %v1005
    %1135 = vmatmul.f32.gmra.mxu0 %v1117
    %v1136 = vpop.f32.mrf.mxu0
    %v1137 = vadd.f32 0.0, %v1136
    %1138 = vdwg.mxu0
    %v1139 = vsel %vm275, %v972, 0
    %1141 = vmatpush.msra.mxu0 0.0
    %1142 = vmatpush.msra.mxu0 0.0
    %1143 = vmatpush.msra.mxu0 0.0
    %1144 = vmatpush.msra.mxu0 0.0
    %1145 = vmatpush.msra.mxu0 0.0
    %1146 = vmatpush.msra.mxu0 0.0
    %1147 = vmatpush.msra.mxu0 0.0
    %1148 = vmatpush.msra.mxu0 0.0
    %1149 = vmatpush.msra.mxu0 0.0
    %1150 = vmatpush.msra.mxu0 0.0
    %1151 = vmatpush.msra.mxu0 0.0
    %1152 = vmatpush.msra.mxu0 0.0
    %1153 = vmatpush.msra.mxu0 0.0
    %1154 = vmatpush.msra.mxu0 0.0
    %1155 = vmatpush.msra.mxu0 0.0
    %1156 = vmatpush.msra.mxu0 %v1037
    %1157 = vmatmul.f32.gmra.mxu0 %v1139
    %v1158 = vpop.f32.mrf.mxu0
    %v1159 = vadd.f32 0.0, %v1158
    %1160 = vdwg.mxu0
    %v1161 = vsel %vm275, %v974, 0
    %1163 = vmatpush.msra.mxu0 0.0
    %1164 = vmatpush.msra.mxu0 0.0
    %1165 = vmatpush.msra.mxu0 0.0
    %1166 = vmatpush.msra.mxu0 0.0
    %1167 = vmatpush.msra.mxu0 0.0
    %1168 = vmatpush.msra.mxu0 0.0
    %1169 = vmatpush.msra.mxu0 0.0
    %1170 = vmatpush.msra.mxu0 0.0
    %1171 = vmatpush.msra.mxu0 0.0
    %1172 = vmatpush.msra.mxu0 0.0
    %1173 = vmatpush.msra.mxu0 0.0
    %1174 = vmatpush.msra.mxu0 0.0
    %1175 = vmatpush.msra.mxu0 0.0
    %1176 = vmatpush.msra.mxu0 0.0
    %1177 = vmatpush.msra.mxu0 0.0
    %1178 = vmatpush.msra.mxu0 %v1069
    %1179 = vmatmul.f32.gmra.mxu0 %v1161
    %v1180 = vpop.f32.mrf.mxu0
    %v1181 = vadd.f32 0.0, %v1180
    %1182 = vdwg.mxu0
    %v1183 = vsel %vm275, %v976, 0
    %1185 = vmatpush.msra.mxu0 0.0
    %1186 = vmatpush.msra.mxu0 0.0
    %1187 = vmatpush.msra.mxu0 0.0
    %1188 = vmatpush.msra.mxu0 0.0
    %1189 = vmatpush.msra.mxu0 0.0
    %1190 = vmatpush.msra.mxu0 0.0
    %1191 = vmatpush.msra.mxu0 0.0
    %1192 = vmatpush.msra.mxu0 0.0
    %1193 = vmatpush.msra.mxu0 0.0
    %1194 = vmatpush.msra.mxu0 0.0
    %1195 = vmatpush.msra.mxu0 0.0
    %1196 = vmatpush.msra.mxu0 0.0
    %1197 = vmatpush.msra.mxu0 0.0
    %1198 = vmatpush.msra.mxu0 0.0
    %1199 = vmatpush.msra.mxu0 0.0
    %1200 = vmatpush.msra.mxu0 %v1101
    %1201 = vmatmul.f32.gmra.mxu0 %v1183
    %v1202 = vpop.f32.mrf.mxu0
    %v1203 = vadd.f32 0.0, %v1202
    %1204 = vdwg.mxu0
    %v1205 = vmul.f32 %v1137, 0.35355338
    %v1206 = vmul.f32 %v1159, 0.35355338
    %v1207 = vmul.f32 %v1181, 0.35355338
    %v1208 = vmul.f32 %v1203, 0.35355338
    %v1209 = vsel %vm369, %v1205, -1e+30
    %v1210 = vsel %vm369, %v1206, -1e+30
    %v1211 = vsel %vm369, %v1207, -1e+30
    %v1212 = vsel %vm369, %v1208, -1e+30
    %v1213 = vsel %vm275, %v1209, -inf
    %1214 = vmax.xlane.f32.xlu0 %v1213
    %v1215 = vpop.xlane.xlu0 %1214
    %v1216 = vsel %vm275, %v1210, -inf
    %1217 = vmax.xlane.f32.xlu0 %v1216
    %v1218 = vpop.xlane.xlu0 %1217
    %v1219 = vsel %vm275, %v1211, -inf
    %1220 = vmax.xlane.f32.xlu0 %v1219
    %v1221 = vpop.xlane.xlu0 %1220
    %v1222 = vsel %vm275, %v1212, -inf
    %1223 = vmax.xlane.f32.xlu0 %v1222
    %v1224 = vpop.xlane.xlu0 %1223
    %v1225 = vsub.f32 %v1209, %v1215
    %v1226 = vsub.f32 %v1210, %v1218
    %v1227 = vsub.f32 %v1211, %v1221
    %v1228 = vsub.f32 %v1212, %v1224
    %v1229 = vmul.f32 %v1225, 1.442695
    %v1230 = vpow.pop %v1229
    %v1231 = vmul.f32 %v1226, 1.442695
    %v1232 = vpow.pop %v1231
    %v1233 = vmul.f32 %v1227, 1.442695
    %v1234 = vpow.pop %v1233
    %v1235 = vmul.f32 %v1228, 1.442695
    %v1236 = vpow.pop %v1235
    %v1237 = vsel %vm275, %v1230, 0.0
    %1238 = vadd.xlane.f32.xlu0 %v1237
    %v1239 = vpop.xlane.xlu0 %1238
    %v1240 = vsel %vm275, %v1232, 0.0
    %1241 = vadd.xlane.f32.xlu0 %v1240
    %v1242 = vpop.xlane.xlu0 %1241
    %v1243 = vsel %vm275, %v1234, 0.0
    %1244 = vadd.xlane.f32.xlu0 %v1243
    %v1245 = vpop.xlane.xlu0 %1244
    %v1246 = vsel %vm275, %v1236, 0.0
    %1247 = vadd.xlane.f32.xlu0 %v1246
    %v1248 = vpop.xlane.xlu0 %1247
    %v1249 = vrcp.pop %v1239
    %v1250 = vmul.f32 %v1239, %v1249
    %v1251 = vsub.f32 1.0, %v1250
    %v1252 = vmul.f32 %v1249, %v1251
    %v1253 = vadd.f32 %v1249, %v1252
    %vm1254 = vweird.f32 %v1239
    %vm1255 = vweird.f32 %v1249
    %vm1256 = vmor %vm1254, %vm1255
    %v1257 = vsel %vm1256, %v1249, %v1253
    %v1258 = vand.u32 2147483647, %v1239
    %vm1259 = vcmp.eq.f32.partialorder %v1258, 8.507059e+37
    %v1260 = vand.u32 %v1239, 2147483648
    %v1261 = vor.u32 1.1754944e-38, %v1260
    %v1262 = vsel %vm1259, %v1261, %v1257
    %v1263 = vrcp.pop %v1242
    %v1264 = vmul.f32 %v1242, %v1263
    %v1265 = vsub.f32 1.0, %v1264
    %v1266 = vmul.f32 %v1263, %v1265
    %v1267 = vadd.f32 %v1263, %v1266
    %vm1268 = vweird.f32 %v1242
    %vm1269 = vweird.f32 %v1263
    %vm1270 = vmor %vm1268, %vm1269
    %v1271 = vsel %vm1270, %v1263, %v1267
    %v1272 = vand.u32 2147483647, %v1242
    %vm1273 = vcmp.eq.f32.partialorder %v1272, 8.507059e+37
    %v1274 = vand.u32 %v1242, 2147483648
    %v1275 = vor.u32 1.1754944e-38, %v1274
    %v1276 = vsel %vm1273, %v1275, %v1271
    %v1277 = vrcp.pop %v1245
    %v1278 = vmul.f32 %v1245, %v1277
    %v1279 = vsub.f32 1.0, %v1278
    %v1280 = vmul.f32 %v1277, %v1279
    %v1281 = vadd.f32 %v1277, %v1280
    %vm1282 = vweird.f32 %v1245
    %vm1283 = vweird.f32 %v1277
    %vm1284 = vmor %vm1282, %vm1283
    %v1285 = vsel %vm1284, %v1277, %v1281
    %v1286 = vand.u32 2147483647, %v1245
    %vm1287 = vcmp.eq.f32.partialorder %v1286, 8.507059e+37
    %v1288 = vand.u32 %v1245, 2147483648
    %v1289 = vor.u32 1.1754944e-38, %v1288
    %v1290 = vsel %vm1287, %v1289, %v1285
    %v1291 = vrcp.pop %v1248
    %v1292 = vmul.f32 %v1248, %v1291
    %v1293 = vsub.f32 1.0, %v1292
    %v1294 = vmul.f32 %v1291, %v1293
    %v1295 = vadd.f32 %v1291, %v1294
    %vm1296 = vweird.f32 %v1248
    %vm1297 = vweird.f32 %v1291
    %vm1298 = vmor %vm1296, %vm1297
    %v1299 = vsel %vm1298, %v1291, %v1295
    %v1300 = vand.u32 2147483647, %v1248
    %vm1301 = vcmp.eq.f32.partialorder %v1300, 8.507059e+37
    %v1302 = vand.u32 %v1248, 2147483648
    %v1303 = vor.u32 1.1754944e-38, %v1302
    %v1304 = vsel %vm1301, %v1303, %v1299
    %v1305 = vmul.f32 %v1230, %v1262
    %v1306 = vmul.f32 %v1232, %v1276
    %v1307 = vmul.f32 %v1234, %v1290
    %v1308 = vmul.f32 %v1236, %v1304
    %1309 = vrot.lane.b32.xlu0 %v121, 64
    %v1310 = vpop.permute.xlu0 %1309
    %1311 = vrot.lane.b32.xlu0 %v972, 64
    %v1312 = vpop.permute.xlu0 %1311
    %1313 = vrot.lane.b32.xlu0 %v974, 64
    %v1314 = vpop.permute.xlu0 %1313
    %1315 = vrot.lane.b32.xlu0 %v976, 64
    %v1316 = vpop.permute.xlu0 %1315
    %1321 = vxpose.xlu0.b32.start [1/16] %v1310, 128
    %1322 = vxpose.xlu0.b32.cont [2/16] 0.0, 128
    %1323 = vxpose.xlu0.b32.cont [3/16] 0.0, 128
    %1324 = vxpose.xlu0.b32.cont [4/16] 0.0, 128
    %1325 = vxpose.xlu0.b32.cont [5/16] 0.0, 128
    %1326 = vxpose.xlu0.b32.cont [6/16] 0.0, 128
    %1327 = vxpose.xlu0.b32.cont [7/16] 0.0, 128
    %1328 = vxpose.xlu0.b32.cont [8/16] 0.0, 128
    %1329 = vxpose.xlu0.b32.cont [9/16] 0.0, 128
    %1330 = vxpose.xlu0.b32.cont [10/16] 0.0, 128
    %1331 = vxpose.xlu0.b32.cont [11/16] 0.0, 128
    %1332 = vxpose.xlu0.b32.cont [12/16] 0.0, 128
    %1333 = vxpose.xlu0.b32.cont [13/16] 0.0, 128
    %1334 = vxpose.xlu0.b32.cont [14/16] 0.0, 128
    %1335 = vxpose.xlu0.b32.cont [15/16] 0.0, 128
    %1336 = vxpose.xlu0.b32.end [16/16] 0.0, 128
    %v1337 = vpop.trf.xlu0
    %v1338 = vpop.trf.xlu0
    %v1339 = vpop.trf.xlu0
    %v1340 = vpop.trf.xlu0
    %v1341 = vpop.trf.xlu0
    %v1342 = vpop.trf.xlu0
    %v1343 = vpop.trf.xlu0
    %v1344 = vpop.trf.xlu0
    %v1345 = vpop.trf.xlu0
    %v1346 = vpop.trf.xlu0
    %v1347 = vpop.trf.xlu0
    %v1348 = vpop.trf.xlu0
    %v1349 = vpop.trf.xlu0
    %v1350 = vpop.trf.xlu0
    %v1351 = vpop.trf.xlu0
    %v1352 = vpop.trf.xlu0
    %1353 = vxpose.xlu0.b32.start [1/16] %v1312, 128
    %1354 = vxpose.xlu0.b32.cont [2/16] 0.0, 128
    %1355 = vxpose.xlu0.b32.cont [3/16] 0.0, 128
    %1356 = vxpose.xlu0.b32.cont [4/16] 0.0, 128
    %1357 = vxpose.xlu0.b32.cont [5/16] 0.0, 128
    %1358 = vxpose.xlu0.b32.cont [6/16] 0.0, 128
    %1359 = vxpose.xlu0.b32.cont [7/16] 0.0, 128
    %1360 = vxpose.xlu0.b32.cont [8/16] 0.0, 128
    %1361 = vxpose.xlu0.b32.cont [9/16] 0.0, 128
    %1362 = vxpose.xlu0.b32.cont [10/16] 0.0, 128
    %1363 = vxpose.xlu0.b32.cont [11/16] 0.0, 128
    %1364 = vxpose.xlu0.b32.cont [12/16] 0.0, 128
    %1365 = vxpose.xlu0.b32.cont [13/16] 0.0, 128
    %1366 = vxpose.xlu0.b32.cont [14/16] 0.0, 128
    %1367 = vxpose.xlu0.b32.cont [15/16] 0.0, 128
    %1368 = vxpose.xlu0.b32.end [16/16] 0.0, 128
    %v1369 = vpop.trf.xlu0
    %v1370 = vpop.trf.xlu0
    %v1371 = vpop.trf.xlu0
    %v1372 = vpop.trf.xlu0
    %v1373 = vpop.trf.xlu0
    %v1374 = vpop.trf.xlu0
    %v1375 = vpop.trf.xlu0
    %v1376 = vpop.trf.xlu0
    %v1377 = vpop.trf.xlu0
    %v1378 = vpop.trf.xlu0
    %v1379 = vpop.trf.xlu0
    %v1380 = vpop.trf.xlu0
    %v1381 = vpop.trf.xlu0
    %v1382 = vpop.trf.xlu0
    %v1383 = vpop.trf.xlu0
    %v1384 = vpop.trf.xlu0
    %1385 = vxpose.xlu0.b32.start [1/16] %v1314, 128
    %1386 = vxpose.xlu0.b32.cont [2/16] 0.0, 128
    %1387 = vxpose.xlu0.b32.cont [3/16] 0.0, 128
    %1388 = vxpose.xlu0.b32.cont [4/16] 0.0, 128
    %1389 = vxpose.xlu0.b32.cont [5/16] 0.0, 128
    %1390 = vxpose.xlu0.b32.cont [6/16] 0.0, 128
    %1391 = vxpose.xlu0.b32.cont [7/16] 0.0, 128
    %1392 = vxpose.xlu0.b32.cont [8/16] 0.0, 128
    %1393 = vxpose.xlu0.b32.cont [9/16] 0.0, 128
    %1394 = vxpose.xlu0.b32.cont [10/16] 0.0, 128
    %1395 = vxpose.xlu0.b32.cont [11/16] 0.0, 128
    %1396 = vxpose.xlu0.b32.cont [12/16] 0.0, 128
    %1397 = vxpose.xlu0.b32.cont [13/16] 0.0, 128
    %1398 = vxpose.xlu0.b32.cont [14/16] 0.0, 128
    %1399 = vxpose.xlu0.b32.cont [15/16] 0.0, 128
    %1400 = vxpose.xlu0.b32.end [16/16] 0.0, 128
    %v1401 = vpop.trf.xlu0
    %v1402 = vpop.trf.xlu0
    %v1403 = vpop.trf.xlu0
    %v1404 = vpop.trf.xlu0
    %v1405 = vpop.trf.xlu0
    %v1406 = vpop.trf.xlu0
    %v1407 = vpop.trf.xlu0
    %v1408 = vpop.trf.xlu0
    %v1409 = vpop.trf.xlu0
    %v1410 = vpop.trf.xlu0
    %v1411 = vpop.trf.xlu0
    %v1412 = vpop.trf.xlu0
    %v1413 = vpop.trf.xlu0
    %v1414 = vpop.trf.xlu0
    %v1415 = vpop.trf.xlu0
    %v1416 = vpop.trf.xlu0
    %1417 = vxpose.xlu0.b32.start [1/16] %v1316, 128
    %1418 = vxpose.xlu0.b32.cont [2/16] 0.0, 128
    %1419 = vxpose.xlu0.b32.cont [3/16] 0.0, 128
    %1420 = vxpose.xlu0.b32.cont [4/16] 0.0, 128
    %1421 = vxpose.xlu0.b32.cont [5/16] 0.0, 128
    %1422 = vxpose.xlu0.b32.cont [6/16] 0.0, 128
    %1423 = vxpose.xlu0.b32.cont [7/16] 0.0, 128
    %1424 = vxpose.xlu0.b32.cont [8/16] 0.0, 128
    %1425 = vxpose.xlu0.b32.cont [9/16] 0.0, 128
    %1426 = vxpose.xlu0.b32.cont [10/16] 0.0, 128
    %1427 = vxpose.xlu0.b32.cont [11/16] 0.0, 128
    %1428 = vxpose.xlu0.b32.cont [12/16] 0.0, 128
    %1429 = vxpose.xlu0.b32.cont [13/16] 0.0, 128
    %1430 = vxpose.xlu0.b32.cont [14/16] 0.0, 128
    %1431 = vxpose.xlu0.b32.cont [15/16] 0.0, 128
    %1432 = vxpose.xlu0.b32.end [16/16] 0.0, 128
    %v1433 = vpop.trf.xlu0
    %v1434 = vpop.trf.xlu0
    %v1435 = vpop.trf.xlu0
    %v1436 = vpop.trf.xlu0
    %v1437 = vpop.trf.xlu0
    %v1438 = vpop.trf.xlu0
    %v1439 = vpop.trf.xlu0
    %v1440 = vpop.trf.xlu0
    %v1441 = vpop.trf.xlu0
    %v1442 = vpop.trf.xlu0
    %v1443 = vpop.trf.xlu0
    %v1444 = vpop.trf.xlu0
    %v1445 = vpop.trf.xlu0
    %v1446 = vpop.trf.xlu0
    %v1447 = vpop.trf.xlu0
    %v1448 = vpop.trf.xlu0
    %v1450 = vsel %vm275, %v1337, 0
    %v1453 = vsel %vm275, %v1305, 0
    %1455 = vmatpush.xpose.msra.mxu0 0.0
    %1456 = vmatpush.xpose.msra.mxu0 0.0
    %1457 = vmatpush.xpose.msra.mxu0 0.0
    %1458 = vmatpush.xpose.msra.mxu0 0.0
    %1459 = vmatpush.xpose.msra.mxu0 0.0
    %1460 = vmatpush.xpose.msra.mxu0 0.0
    %1461 = vmatpush.xpose.msra.mxu0 0.0
    %1462 = vmatpush.xpose.msra.mxu0 0.0
    %1463 = vmatpush.xpose.msra.mxu0 0.0
    %1464 = vmatpush.xpose.msra.mxu0 0.0
    %1465 = vmatpush.xpose.msra.mxu0 0.0
    %1466 = vmatpush.xpose.msra.mxu0 0.0
    %1467 = vmatpush.xpose.msra.mxu0 0.0
    %1468 = vmatpush.xpose.msra.mxu0 0.0
    %1469 = vmatpush.xpose.msra.mxu0 0.0
    %1470 = vmatpush.xpose.msra.mxu0 %v1453
    %1471 = vmatmul.f32.gmra.mxu0 %v1450
    %v1472 = vpop.f32.mrf.mxu0
    %v1473 = vadd.f32 0.0, %v1472
    %1474 = vdwg.mxu0
    %v1476 = vsel %vm275, %v1369, 0
    %v1479 = vsel %vm275, %v1306, 0
    %1481 = vmatpush.xpose.msra.mxu0 0.0
    %1482 = vmatpush.xpose.msra.mxu0 0.0
    %1483 = vmatpush.xpose.msra.mxu0 0.0
    %1484 = vmatpush.xpose.msra.mxu0 0.0
    %1485 = vmatpush.xpose.msra.mxu0 0.0
    %1486 = vmatpush.xpose.msra.mxu0 0.0
    %1487 = vmatpush.xpose.msra.mxu0 0.0
    %1488 = vmatpush.xpose.msra.mxu0 0.0
    %1489 = vmatpush.xpose.msra.mxu0 0.0
    %1490 = vmatpush.xpose.msra.mxu0 0.0
    %1491 = vmatpush.xpose.msra.mxu0 0.0
    %1492 = vmatpush.xpose.msra.mxu0 0.0
    %1493 = vmatpush.xpose.msra.mxu0 0.0
    %1494 = vmatpush.xpose.msra.mxu0 0.0
    %1495 = vmatpush.xpose.msra.mxu0 0.0
    %1496 = vmatpush.xpose.msra.mxu0 %v1479
    %1497 = vmatmul.f32.gmra.mxu0 %v1476
    %v1498 = vpop.f32.mrf.mxu0
    %v1499 = vadd.f32 0.0, %v1498
    %1500 = vdwg.mxu0
    %v1502 = vsel %vm275, %v1401, 0
    %v1505 = vsel %vm275, %v1307, 0
    %1507 = vmatpush.xpose.msra.mxu0 0.0
    %1508 = vmatpush.xpose.msra.mxu0 0.0
    %1509 = vmatpush.xpose.msra.mxu0 0.0
    %1510 = vmatpush.xpose.msra.mxu0 0.0
    %1511 = vmatpush.xpose.msra.mxu0 0.0
    %1512 = vmatpush.xpose.msra.mxu0 0.0
    %1513 = vmatpush.xpose.msra.mxu0 0.0
    %1514 = vmatpush.xpose.msra.mxu0 0.0
    %1515 = vmatpush.xpose.msra.mxu0 0.0
    %1516 = vmatpush.xpose.msra.mxu0 0.0
    %1517 = vmatpush.xpose.msra.mxu0 0.0
    %1518 = vmatpush.xpose.msra.mxu0 0.0
    %1519 = vmatpush.xpose.msra.mxu0 0.0
    %1520 = vmatpush.xpose.msra.mxu0 0.0
    %1521 = vmatpush.xpose.msra.mxu0 0.0
    %1522 = vmatpush.xpose.msra.mxu0 %v1505
    %1523 = vmatmul.f32.gmra.mxu0 %v1502
    %v1524 = vpop.f32.mrf.mxu0
    %v1525 = vadd.f32 0.0, %v1524
    %1526 = vdwg.mxu0
    %v1528 = vsel %vm275, %v1433, 0
    %v1531 = vsel %vm275, %v1308, 0
    %1533 = vmatpush.xpose.msra.mxu0 0.0
    %1534 = vmatpush.xpose.msra.mxu0 0.0
    %1535 = vmatpush.xpose.msra.mxu0 0.0
    %1536 = vmatpush.xpose.msra.mxu0 0.0
    %1537 = vmatpush.xpose.msra.mxu0 0.0
    %1538 = vmatpush.xpose.msra.mxu0 0.0
    %1539 = vmatpush.xpose.msra.mxu0 0.0
    %1540 = vmatpush.xpose.msra.mxu0 0.0
    %1541 = vmatpush.xpose.msra.mxu0 0.0
    %1542 = vmatpush.xpose.msra.mxu0 0.0
    %1543 = vmatpush.xpose.msra.mxu0 0.0
    %1544 = vmatpush.xpose.msra.mxu0 0.0
    %1545 = vmatpush.xpose.msra.mxu0 0.0
    %1546 = vmatpush.xpose.msra.mxu0 0.0
    %1547 = vmatpush.xpose.msra.mxu0 0.0
    %1548 = vmatpush.xpose.msra.mxu0 %v1531
    %1549 = vmatmul.f32.gmra.mxu0 %v1528
    %v1550 = vpop.f32.mrf.mxu0
    %v1551 = vadd.f32 0.0, %v1550
    %1552 = vdwg.mxu0
    %1553 = vxpose.xlu0.b32.start [1/16] %v1473, 128
    %1554 = vxpose.xlu0.b32.cont [2/16] 0.0, 128
    %1555 = vxpose.xlu0.b32.cont [3/16] 0.0, 128
    %1556 = vxpose.xlu0.b32.cont [4/16] 0.0, 128
    %1557 = vxpose.xlu0.b32.cont [5/16] 0.0, 128
    %1558 = vxpose.xlu0.b32.cont [6/16] 0.0, 128
    %1559 = vxpose.xlu0.b32.cont [7/16] 0.0, 128
    %1560 = vxpose.xlu0.b32.cont [8/16] 0.0, 128
    %1561 = vxpose.xlu0.b32.cont [9/16] 0.0, 128
    %1562 = vxpose.xlu0.b32.cont [10/16] 0.0, 128
    %1563 = vxpose.xlu0.b32.cont [11/16] 0.0, 128
    %1564 = vxpose.xlu0.b32.cont [12/16] 0.0, 128
    %1565 = vxpose.xlu0.b32.cont [13/16] 0.0, 128
    %1566 = vxpose.xlu0.b32.cont [14/16] 0.0, 128
    %1567 = vxpose.xlu0.b32.cont [15/16] 0.0, 128
    %1568 = vxpose.xlu0.b32.end [16/16] 0.0, 128
    %v1569 = vpop.trf.xlu0
    %v1570 = vpop.trf.xlu0
    %v1571 = vpop.trf.xlu0
    %v1572 = vpop.trf.xlu0
    %v1573 = vpop.trf.xlu0
    %v1574 = vpop.trf.xlu0
    %v1575 = vpop.trf.xlu0
    %v1576 = vpop.trf.xlu0
    %v1577 = vpop.trf.xlu0
    %v1578 = vpop.trf.xlu0
    %v1579 = vpop.trf.xlu0
    %v1580 = vpop.trf.xlu0
    %v1581 = vpop.trf.xlu0
    %v1582 = vpop.trf.xlu0
    %v1583 = vpop.trf.xlu0
    %v1584 = vpop.trf.xlu0
    %1585 = vxpose.xlu0.b32.start [1/16] %v1499, 128
    %1586 = vxpose.xlu0.b32.cont [2/16] 0.0, 128
    %1587 = vxpose.xlu0.b32.cont [3/16] 0.0, 128
    %1588 = vxpose.xlu0.b32.cont [4/16] 0.0, 128
    %1589 = vxpose.xlu0.b32.cont [5/16] 0.0, 128
    %1590 = vxpose.xlu0.b32.cont [6/16] 0.0, 128
    %1591 = vxpose.xlu0.b32.cont [7/16] 0.0, 128
    %1592 = vxpose.xlu0.b32.cont [8/16] 0.0, 128
    %1593 = vxpose.xlu0.b32.cont [9/16] 0.0, 128
    %1594 = vxpose.xlu0.b32.cont [10/16] 0.0, 128
    %1595 = vxpose.xlu0.b32.cont [11/16] 0.0, 128
    %1596 = vxpose.xlu0.b32.cont [12/16] 0.0, 128
    %1597 = vxpose.xlu0.b32.cont [13/16] 0.0, 128
    %1598 = vxpose.xlu0.b32.cont [14/16] 0.0, 128
    %1599 = vxpose.xlu0.b32.cont [15/16] 0.0, 128
    %1600 = vxpose.xlu0.b32.end [16/16] 0.0, 128
    %v1601 = vpop.trf.xlu0
    %v1602 = vpop.trf.xlu0
    %v1603 = vpop.trf.xlu0
    %v1604 = vpop.trf.xlu0
    %v1605 = vpop.trf.xlu0
    %v1606 = vpop.trf.xlu0
    %v1607 = vpop.trf.xlu0
    %v1608 = vpop.trf.xlu0
    %v1609 = vpop.trf.xlu0
    %v1610 = vpop.trf.xlu0
    %v1611 = vpop.trf.xlu0
    %v1612 = vpop.trf.xlu0
    %v1613 = vpop.trf.xlu0
    %v1614 = vpop.trf.xlu0
    %v1615 = vpop.trf.xlu0
    %v1616 = vpop.trf.xlu0
    %1617 = vxpose.xlu0.b32.start [1/16] %v1525, 128
    %1618 = vxpose.xlu0.b32.cont [2/16] 0.0, 128
    %1619 = vxpose.xlu0.b32.cont [3/16] 0.0, 128
    %1620 = vxpose.xlu0.b32.cont [4/16] 0.0, 128
    %1621 = vxpose.xlu0.b32.cont [5/16] 0.0, 128
    %1622 = vxpose.xlu0.b32.cont [6/16] 0.0, 128
    %1623 = vxpose.xlu0.b32.cont [7/16] 0.0, 128
    %1624 = vxpose.xlu0.b32.cont [8/16] 0.0, 128
    %1625 = vxpose.xlu0.b32.cont [9/16] 0.0, 128
    %1626 = vxpose.xlu0.b32.cont [10/16] 0.0, 128
    %1627 = vxpose.xlu0.b32.cont [11/16] 0.0, 128
    %1628 = vxpose.xlu0.b32.cont [12/16] 0.0, 128
    %1629 = vxpose.xlu0.b32.cont [13/16] 0.0, 128
    %1630 = vxpose.xlu0.b32.cont [14/16] 0.0, 128
    %1631 = vxpose.xlu0.b32.cont [15/16] 0.0, 128
    %1632 = vxpose.xlu0.b32.end [16/16] 0.0, 128
    %v1633 = vpop.trf.xlu0
    %v1634 = vpop.trf.xlu0
    %v1635 = vpop.trf.xlu0
    %v1636 = vpop.trf.xlu0
    %v1637 = vpop.trf.xlu0
    %v1638 = vpop.trf.xlu0
    %v1639 = vpop.trf.xlu0
    %v1640 = vpop.trf.xlu0
    %v1641 = vpop.trf.xlu0
    %v1642 = vpop.trf.xlu0
    %v1643 = vpop.trf.xlu0
    %v1644 = vpop.trf.xlu0
    %v1645 = vpop.trf.xlu0
    %v1646 = vpop.trf.xlu0
    %v1647 = vpop.trf.xlu0
    %v1648 = vpop.trf.xlu0
    %1649 = vxpose.xlu0.b32.start [1/16] %v1551, 128
    %1650 = vxpose.xlu0.b32.cont [2/16] 0.0, 128
    %1651 = vxpose.xlu0.b32.cont [3/16] 0.0, 128
    %1652 = vxpose.xlu0.b32.cont [4/16] 0.0, 128
    %1653 = vxpose.xlu0.b32.cont [5/16] 0.0, 128
    %1654 = vxpose.xlu0.b32.cont [6/16] 0.0, 128
    %1655 = vxpose.xlu0.b32.cont [7/16] 0.0, 128
    %1656 = vxpose.xlu0.b32.cont [8/16] 0.0, 128
    %1657 = vxpose.xlu0.b32.cont [9/16] 0.0, 128
    %1658 = vxpose.xlu0.b32.cont [10/16] 0.0, 128
    %1659 = vxpose.xlu0.b32.cont [11/16] 0.0, 128
    %1660 = vxpose.xlu0.b32.cont [12/16] 0.0, 128
    %1661 = vxpose.xlu0.b32.cont [13/16] 0.0, 128
    %1662 = vxpose.xlu0.b32.cont [14/16] 0.0, 128
    %1663 = vxpose.xlu0.b32.cont [15/16] 0.0, 128
    %1664 = vxpose.xlu0.b32.end [16/16] 0.0, 128
    %v1665 = vpop.trf.xlu0
    %v1666 = vpop.trf.xlu0
    %v1667 = vpop.trf.xlu0
    %v1668 = vpop.trf.xlu0
    %v1669 = vpop.trf.xlu0
    %v1670 = vpop.trf.xlu0
    %v1671 = vpop.trf.xlu0
    %v1672 = vpop.trf.xlu0
    %v1673 = vpop.trf.xlu0
    %v1674 = vpop.trf.xlu0
    %v1675 = vpop.trf.xlu0
    %v1676 = vpop.trf.xlu0
    %v1677 = vpop.trf.xlu0
    %v1678 = vpop.trf.xlu0
    %v1679 = vpop.trf.xlu0
    %v1680 = vpop.trf.xlu0
    %v1681 = vrot.slane %v1633, 4
    %v1682 = vsel %vm843, %v1681, %v1569
    %v1683 = vrot.slane %v1569, 4
    %v1684 = vsel %vm843, %v1633, %v1683
    %v1686 = vunpack.c.l.s4 1983009808
    %v1687 = vunpack.c.0.s8 %v1686
    %v1688 = vperm.slane %v1682, %v1687
    %v1690 = vunpack.c.l.s4 1983009808
    %v1691 = vunpack.c.0.s8 %v1690
    %v1692 = vperm.slane %v1684, %v1691
    %v1693 = vrot.slane %v1665, 4
    %v1694 = vsel %vm843, %v1693, %v1601
    %v1695 = vrot.slane %v1601, 4
    %v1696 = vsel %vm843, %v1665, %v1695
    %v1698 = vunpack.c.l.s4 1983009808
    %v1699 = vunpack.c.0.s8 %v1698
    %v1700 = vperm.slane %v1694, %v1699
    %v1702 = vunpack.c.l.s4 1983009808
    %v1703 = vunpack.c.0.s8 %v1702
    %v1704 = vperm.slane %v1696, %v1703
    %v1705 = vrot.slane %v1700, 4
    %v1706 = vsel %vm843, %v1705, %v1688
    %v1707 = vrot.slane %v1688, 4
    %v1708 = vsel %vm843, %v1700, %v1707
    %v1710 = vunpack.c.l.s4 1934713408
    %v1711 = vunpack.c.0.s8 %v1710
    %v1712 = vperm.slane %v1706, %v1711
    %v1714 = vunpack.c.l.s4 1934713408
    %v1715 = vunpack.c.0.s8 %v1714
    %v1716 = vperm.slane %v1708, %v1715
    %v1717 = vrot.slane %v1704, 4
    %v1718 = vsel %vm843, %v1717, %v1692
    %v1719 = vrot.slane %v1692, 4
    %v1720 = vsel %vm843, %v1704, %v1719
    %v1722 = vunpack.c.l.s4 1934713408
    %v1723 = vunpack.c.0.s8 %v1722
    %v1724 = vperm.slane %v1718, %v1723
    %v1726 = vunpack.c.l.s4 1934713408
    %v1727 = vunpack.c.0.s8 %v1726
    %v1728 = vperm.slane %v1720, %v1727
    %v1729 = vrot.slane %v1712, 4
    %v1730 = vsel %vm843, 0.0, %v1729
    %v1731 = vrot.slane %v1716, 4
    %v1732 = vsel %vm843, 0.0, %v1731
    %v1733 = vrot.slane %v1724, 4
    %v1734 = vsel %vm843, 0.0, %v1733
    %v1735 = vrot.slane %v1728, 4
    %v1736 = vsel %vm843, 0.0, %v1735
    %v1737 = vsel %vm843, %v1731, %v1712
    %v1739 = vunpack.c.l.s4 1983009808
    %v1740 = vunpack.c.0.s8 %v1739
    %v1741 = vperm.slane %v1737, %v1740
    %v1742 = vrot.slane %v1732, 4
    %v1743 = vsel %vm843, %v1742, %v1730
    %v1745 = vunpack.c.l.s4 1983009808
    %v1746 = vunpack.c.0.s8 %v1745
    %v1747 = vperm.slane %v1743, %v1746
    %v1748 = vsel %vm843, %v1735, %v1724
    %v1750 = vunpack.c.l.s4 1983009808
    %v1751 = vunpack.c.0.s8 %v1750
    %v1752 = vperm.slane %v1748, %v1751
    %v1753 = vrot.slane %v1736, 4
    %v1754 = vsel %vm843, %v1753, %v1734
    %v1756 = vunpack.c.l.s4 1983009808
    %v1757 = vunpack.c.0.s8 %v1756
    %v1758 = vperm.slane %v1754, %v1757
    %v1759 = vrot.slane %v1747, 4
    %v1760 = vsel %vm843, %v1759, %v1741
    %v1761 = vrot.slane %v1741, 4
    %v1762 = vsel %vm843, %v1747, %v1761
    %v1764 = vunpack.c.l.s4 1934713408
    %v1765 = vunpack.c.0.s8 %v1764
    %v1766 = vperm.slane %v1760, %v1765
    %v1768 = vunpack.c.l.s4 1934713408
    %v1769 = vunpack.c.0.s8 %v1768
    %v1770 = vperm.slane %v1762, %v1769
    %v1771 = vrot.slane %v1758, 4
    %v1772 = vsel %vm843, %v1771, %v1752
    %v1773 = vrot.slane %v1752, 4
    %v1774 = vsel %vm843, %v1758, %v1773
    %v1776 = vunpack.c.l.s4 1934713408
    %v1777 = vunpack.c.0.s8 %v1776
    %v1778 = vperm.slane %v1772, %v1777
    %v1780 = vunpack.c.l.s4 1934713408
    %v1781 = vunpack.c.0.s8 %v1780
    %v1782 = vperm.slane %v1774, %v1781
    %v1783 = vrot.slane %v1778, 4
    %v1784 = vsel %vm843, %v1783, %v1766
    %v1785 = vrot.slane %v1766, 4
    %v1786 = vsel %vm843, %v1778, %v1785
    %v1787 = vrot.slane %v1782, 4
    %v1788 = vsel %vm843, %v1787, %v1770
    %v1789 = vrot.slane %v1770, 4
    %v1790 = vsel %vm843, %v1782, %v1789
    %1792 = vrot.lane.b32.xlu0 %v1786, 8
    %v1793 = vpop.permute.xlu0 %1792
    %1796 = vrot.lane.b32.xlu0 %v1788, 16
    %v1797 = vpop.permute.xlu0 %1796
    %1800 = vrot.lane.b32.xlu0 %v1790, 24
    %v1801 = vpop.permute.xlu0 %1800
    %v1803 = vsel %vm275, %v1784, %v1793
    %v1804 = vsel %vm966, %v1803, %v1797
    %v1805 = vsel %vm968, %v1804, %v1801
    %v1806 = vld [vmem:[%s2] sm:$0xff]
    %v1807 = vld [vmem:[%s2 + $0x8] sm:$0xff]
    %v1808 = vld [vmem:[%s2 + $0x10] sm:$0xff]
    %v1809 = vld [vmem:[%s2 + $0x18] sm:$0xff]
    %v1810 = vperm.slane %v29, 4
    %v1812 = vsel %vm31, %v969, 0
    %v1815 = vsel %vm31, %v1805, 0
    %1817 = vmatpush.msra.mxu0 0.0
    %1818 = vmatpush.msra.mxu0 0.0
    %1819 = vmatpush.msra.mxu0 0.0
    %1820 = vmatpush.msra.mxu0 0.0
    %1821 = vmatpush.msra.mxu0 0.0
    %1822 = vmatpush.msra.mxu0 0.0
    %1823 = vmatpush.msra.mxu0 0.0
    %1824 = vmatpush.msra.mxu0 0.0
    %1825 = vmatpush.msra.mxu0 0.0
    %1826 = vmatpush.msra.mxu0 0.0
    %1827 = vmatpush.msra.mxu0 0.0
    %1828 = vmatpush.msra.mxu0 0.0
    %1829 = vmatpush.msra.mxu0 %v1809
    %1830 = vmatpush.msra.mxu0 %v1808
    %1831 = vmatpush.msra.mxu0 %v1807
    %1832 = vmatpush.msra.mxu0 %v1806
    %1833 = vmatmul.f32.gmra.mxu0 %v1812
    %v1834 = vpop.f32.mrf.mxu0
    %v1835 = vadd.f32 %v1810, %v1834
    %1836 = vmatmul.f32.gmra.mxu0 %v1815
    %v1837 = vpop.f32.mrf.mxu0
    %v1838 = vadd.f32 %v1810, %v1837
    %1839 = vdwg.mxu0
    %v1840 = vadd.f32 %v27, %v1835
    %v1841 = vadd.f32 %v28, %v1838
    %v1842 = vsel %vm31, %v1840, 0.0
    %1843 = vadd.xlane.f32.xlu0 %v1842
    %v1844 = vpop.xlane.xlu0 %1843
    %v1845 = vsel %vm31, %v1841, 0.0
    %1846 = vadd.xlane.f32.xlu0 %v1845
    %v1847 = vpop.xlane.xlu0 %1846
    %v1848 = vmul.f32 %v1844, %v44
    %v1849 = vmul.f32 %v1847, %v44
    %v1850 = vsub.f32 %v1840, %v1848
    %v1851 = vsub.f32 %v1841, %v1849
    %v1852 = vmul.f32 %v1850, %v1850
    %v1853 = vmul.f32 %v1851, %v1851
    %v1854 = vsel %vm31, %v1852, 0.0
    %1855 = vadd.xlane.f32.xlu0 %v1854
    %v1856 = vpop.xlane.xlu0 %1855
    %v1857 = vsel %vm31, %v1853, 0.0
    %1858 = vadd.xlane.f32.xlu0 %v1857
    %v1859 = vpop.xlane.xlu0 %1858
    %v1860 = vmul.f32 %v1856, %v44
    %v1861 = vmul.f32 %v1859, %v44
    %v1862 = vadd.f32 %v1860, 1e-05
    %v1863 = vadd.f32 %v1861, 1e-05
    %v1864 = vrsqrt.pop %v1862
    %v1865 = vmul.f32 %v1864, %v1862
    %v1866 = vmul.f32 %v1865, %v1864
    %v1867 = vmul.f32 0.5, %v1866
    %v1868 = vsub.f32 1.5, %v1867
    %v1869 = vmul.f32 %v1864, %v1868
    %vm1870 = vweird.f32 %v1862
    %vm1871 = vweird.f32 %v1864
    %vm1872 = vmor %vm1870, %vm1871
    %v1873 = vsel %vm1872, %v1864, %v1869
    %v1874 = vrsqrt.pop %v1863
    %v1875 = vmul.f32 %v1874, %v1863
    %v1876 = vmul.f32 %v1875, %v1874
    %v1877 = vmul.f32 0.5, %v1876
    %v1878 = vsub.f32 1.5, %v1877
    %v1879 = vmul.f32 %v1874, %v1878
    %vm1880 = vweird.f32 %v1863
    %vm1881 = vweird.f32 %v1874
    %vm1882 = vmor %vm1880, %vm1881
    %v1883 = vsel %vm1882, %v1874, %v1879
    %v1884 = vmul.f32 %v1850, %v1873
    %v1885 = vmul.f32 %v1851, %v1883
    %v1886 = vperm.slane %v29, 2
    %v1887 = vmul.f32 %v1884, %v1886
    %v1888 = vmul.f32 %v1885, %v1886
    %v1889 = vperm.slane %v29, 3
    %v1890 = vadd.f32 %v1887, %v1889
    %v1891 = vadd.f32 %v1888, %v1889
    %v1892 = vld [vmem:[%s3] sm:$0xff]
    %v1893 = vld [vmem:[%s3 + $0x8] sm:$0xff]
    %v1894 = vld [vmem:[%s3 + $0x10] sm:$0xff]
    %v1895 = vld [vmem:[%s3 + $0x18] sm:$0xff]
    %v1896 = vperm.slane %v30, 1
    %v1898 = vsel %vm31, %v1890, 0
    %v1901 = vsel %vm31, %v1891, 0
    %1903 = vmatpush.msra.mxu0 0.0
    %1904 = vmatpush.msra.mxu0 0.0
    %1905 = vmatpush.msra.mxu0 0.0
    %1906 = vmatpush.msra.mxu0 0.0
    %1907 = vmatpush.msra.mxu0 0.0
    %1908 = vmatpush.msra.mxu0 0.0
    %1909 = vmatpush.msra.mxu0 0.0
    %1910 = vmatpush.msra.mxu0 0.0
    %1911 = vmatpush.msra.mxu0 0.0
    %1912 = vmatpush.msra.mxu0 0.0
    %1913 = vmatpush.msra.mxu0 0.0
    %1914 = vmatpush.msra.mxu0 0.0
    %1915 = vmatpush.msra.mxu0 %v1895
    %1916 = vmatpush.msra.mxu0 %v1894
    %1917 = vmatpush.msra.mxu0 %v1893
    %1918 = vmatpush.msra.mxu0 %v1892
    %1919 = vmatmul.f32.gmra.mxu0 %v1898
    %v1920 = vpop.f32.mrf.mxu0
    %v1921 = vadd.f32 %v1896, %v1920
    %1922 = vmatmul.f32.gmra.mxu0 %v1901
    %v1923 = vpop.f32.mrf.mxu0
    %v1924 = vadd.f32 %v1896, %v1923
    %1925 = vdwg.mxu0
    %v1926 = vmul.f32 %v1921, 0.5
    %v1927 = vmul.f32 %v1924, 0.5
    %v1928 = vrcp.pop 1.4142135
    %v1929 = vmul.f32 1.4142135, %v1928
    %v1930 = vsub.f32 1.0, %v1929
    %v1931 = vmul.f32 %v1928, %v1930
    %v1932 = vadd.f32 %v1928, %v1931
    %vm1933 = vweird.f32 %v1928
    %v1934 = vsel %vm1933, %v1928, %v1932
    %v1935 = vmul.f32 %v1921, %v1934
    %v1936 = vmul.f32 %v1924, %v1934
    %v1937 = vmul.f32 %v1935, %v1935
    %v1938 = vmin.f32 16.0, %v1937
    %v1939 = vmul.f32 %v1938, 2.1237322e-06
    %v1940 = vadd.f32 %v1939, 0.00028619796
    %v1941 = vmul.f32 %v1938, %v1940
    %v1942 = vadd.f32 %v1941, 0.0036580483
    %v1943 = vmul.f32 %v1938, %v1942
    %v1944 = vadd.f32 %v1943, 0.05243302
    %v1945 = vmul.f32 %v1938, %v1944
    %v1946 = vadd.f32 %v1945, 0.18741608
    %v1947 = vmul.f32 %v1938, %v1946
    %v1948 = vadd.f32 %v1947, 1.1283791
    %v1949 = vmul.f32 %v1935, %v1948
    %v1950 = vmul.f32 %v1938, 3.8918573e-05
    %v1951 = vadd.f32 %v1950, 0.001143296
    %v1952 = vmul.f32 %v1938, %v1951
    %v1953 = vadd.f32 %v1952, 0.014752088
    %v1954 = vmul.f32 %v1938, %v1953
    %v1955 = vadd.f32 %v1954, 0.112945676
    %v1956 = vmul.f32 %v1938, %v1955
    %v1957 = vadd.f32 %v1956, 0.4994258
    %v1958 = vmul.f32 %v1938, %v1957
    %v1959 = vadd.f32 %v1958, 1.0
    %v1960 = vrcp.pop %v1959
    %v1961 = vmul.f32 %v1959, %v1960
    %v1962 = vsub.f32 1.0, %v1961
    %v1963 = vmul.f32 %v1960, %v1962
    %v1964 = vadd.f32 %v1960, %v1963
    %vm1965 = vweird.f32 %v1959
    %vm1966 = vweird.f32 %v1960
    %vm1967 = vmor %vm1965, %vm1966
    %v1968 = vsel %vm1967, %v1960, %v1964
    %v1969 = vand.u32 2147483647, %v1959
    %vm1970 = vcmp.eq.f32.partialorder %v1969, 8.507059e+37
    %v1971 = vand.u32 %v1959, 2147483648
    %v1972 = vor.u32 1.1754944e-38, %v1971
    %v1973 = vsel %vm1970, %v1972, %v1968
    %v1974 = vmul.f32 %v1949, %v1973
    %v1975 = vmin.f32 %v1974, 1.0
    %v1976 = vmax.f32 %v1975, -1.0
    %v1977 = vmul.f32 %v1936, %v1936
    %v1978 = vmin.f32 16.0, %v1977
    %v1979 = vmul.f32 %v1978, 2.1237322e-06
    %v1980 = vadd.f32 %v1979, 0.00028619796
    %v1981 = vmul.f32 %v1978, %v1980
    %v1982 = vadd.f32 %v1981, 0.0036580483
    %v1983 = vmul.f32 %v1978, %v1982
    %v1984 = vadd.f32 %v1983, 0.05243302
    %v1985 = vmul.f32 %v1978, %v1984
    %v1986 = vadd.f32 %v1985, 0.18741608
    %v1987 = vmul.f32 %v1978, %v1986
    %v1988 = vadd.f32 %v1987, 1.1283791
    %v1989 = vmul.f32 %v1936, %v1988
    %v1990 = vmul.f32 %v1978, 3.8918573e-05
    %v1991 = vadd.f32 %v1990, 0.001143296
    %v1992 = vmul.f32 %v1978, %v1991
    %v1993 = vadd.f32 %v1992, 0.014752088
    %v1994 = vmul.f32 %v1978, %v1993
    %v1995 = vadd.f32 %v1994, 0.112945676
    %v1996 = vmul.f32 %v1978, %v1995
    %v1997 = vadd.f32 %v1996, 0.4994258
    %v1998 = vmul.f32 %v1978, %v1997
    %v1999 = vadd.f32 %v1998, 1.0
    %v2000 = vrcp.pop %v1999
    %v2001 = vmul.f32 %v1999, %v2000
    %v2002 = vsub.f32 1.0, %v2001
    %v2003 = vmul.f32 %v2000, %v2002
    %v2004 = vadd.f32 %v2000, %v2003
    %vm2005 = vweird.f32 %v1999
    %vm2006 = vweird.f32 %v2000
    %vm2007 = vmor %vm2005, %vm2006
    %v2008 = vsel %vm2007, %v2000, %v2004
    %v2009 = vand.u32 2147483647, %v1999
    %vm2010 = vcmp.eq.f32.partialorder %v2009, 8.507059e+37
    %v2011 = vand.u32 %v1999, 2147483648
    %v2012 = vor.u32 1.1754944e-38, %v2011
    %v2013 = vsel %vm2010, %v2012, %v2008
    %v2014 = vmul.f32 %v1989, %v2013
    %v2015 = vmin.f32 %v2014, 1.0
    %v2016 = vmax.f32 %v2015, -1.0
    %v2017 = vadd.f32 %v1976, 1.0
    %v2018 = vadd.f32 %v2016, 1.0
    %v2019 = vmul.f32 %v1926, %v2017
    %v2020 = vmul.f32 %v1927, %v2018
    %v2021 = vld [vmem:[%s4] sm:$0xff]
    %v2022 = vld [vmem:[%s4 + $0x8] sm:$0xff]
    %v2023 = vld [vmem:[%s4 + $0x10] sm:$0xff]
    %v2024 = vld [vmem:[%s4 + $0x18] sm:$0xff]
    %v2025 = vld [vmem:[%s4 + $0x20] sm:$0xff]
    %v2026 = vld [vmem:[%s4 + $0x28] sm:$0xff]
    %v2027 = vld [vmem:[%s4 + $0x30] sm:$0xff]
    %v2028 = vld [vmem:[%s4 + $0x38] sm:$0xff]
    %v2029 = vld [vmem:[%s4 + $0x40] sm:$0xff]
    %v2030 = vld [vmem:[%s4 + $0x48] sm:$0xff]
    %v2031 = vld [vmem:[%s4 + $0x50] sm:$0xff]
    %v2032 = vld [vmem:[%s4 + $0x58] sm:$0xff]
    %v2033 = vld [vmem:[%s4 + $0x60] sm:$0xff]
    %v2034 = vld [vmem:[%s4 + $0x68] sm:$0xff]
    %v2035 = vld [vmem:[%s4 + $0x70] sm:$0xff]
    %v2036 = vld [vmem:[%s4 + $0x78] sm:$0xff]
    %v2037 = vperm.slane %v29, 5
    %2038 = vmatpush.msra.mxu0 %v2036
    %2039 = vmatpush.msra.mxu0 %v2035
    %2040 = vmatpush.msra.mxu0 %v2034
    %2041 = vmatpush.msra.mxu0 %v2033
    %2042 = vmatpush.msra.mxu0 %v2032
    %2043 = vmatpush.msra.mxu0 %v2031
    %2044 = vmatpush.msra.mxu0 %v2030
    %2045 = vmatpush.msra.mxu0 %v2029
    %2046 = vmatpush.msra.mxu0 %v2028
    %2047 = vmatpush.msra.mxu0 %v2027
    %2048 = vmatpush.msra.mxu0 %v2026
    %2049 = vmatpush.msra.mxu0 %v2025
    %2050 = vmatpush.msra.mxu0 %v2024
    %2051 = vmatpush.msra.mxu0 %v2023
    %2052 = vmatpush.msra.mxu0 %v2022
    %2053 = vmatpush.msra.mxu0 %v2021
    %2054 = vmatmul.f32.gmra.mxu0 %v2019
    %v2055 = vpop.f32.mrf.mxu0
    %v2056 = vadd.f32 %v2037, %v2055
    %2057 = vmatmul.f32.gmra.mxu0 %v2020
    %v2058 = vpop.f32.mrf.mxu0
    %v2059 = vadd.f32 %v2037, %v2058
    %2060 = vdwg.mxu0
    %v2061 = vadd.f32 %v1840, %v2056
    %v2062 = vadd.f32 %v1841, %v2059
    %2063 = vst.msk [vmem:[#allocation2] sm:$0xff] %vm31, %v2061
    %2064 = vst.msk [vmem:[#allocation2 + $0x8] sm:$0xff] %vm31, %v2062
    // Predicated region
    $region30: #{tpu_custom_call.1} parent=1 // pred_check
      _
    $region31: #{tpu_custom_call.1} parent=1 // pred_check_branch
      %2066 = sbr.rel (0) target = $region33
    $region32: #{tpu_custom_call.1} parent=1 // pred_region
      %2068 = vsyncadd [#allocation3], 0
      %s2069 = sshll.u32 [#allocation2], 4
      %s2070 = int_to_ptr.vmem [resolvable:$true] %s2069
      %s2071 = sshll.u32 %s7, 4
      %s2072 = int_to_ptr.hbm [resolvable:$true] %s2071
      %2077 = dma.vmem_to_hbm [thread:$0]  %s2070, 256, %s2072, [#allocation3], 128, 128, 8
    $region33: #{tpu_custom_call.1} parent=1 // pred_fallthru
      _
    // Predicated region
    $region34: #{tpu_custom_call.1} parent=1 // pred_check
      _
    $region35: #{tpu_custom_call.1} parent=1 // pred_check_branch
      %2079 = sbr.rel (0) target = $region37
    $region36: #{tpu_custom_call.1} parent=1 // pred_region
      %2081 = dma.done [#allocation3], 256
    $region37: #{tpu_custom_call.1} parent=1 // pred_fallthru
      _
    %2082 = vsyncpa [#allocation3], 1

</llo_original>
